<compile_context>
chip_gen: v5e
topology: v5e:2x2
jax: 0.10.0
libtpu: 0.0.40
codegen_flags: <defaults>
</compile_context>

<pallas_src>
import jax
import jax.numpy as jnp
from jax.experimental import pallas as pl
from jax.experimental.pallas import tpu as pltpu

IN_DIM = 6
HID_DIM = 12
OUT_DIM = 6
LANES = 128

# Sublane rows of batch per grid step (each sublane row carries 128 batch
# elements).  512 -> 65536 rows/step; in+out blocks double-buffered use
# ~6.3 MiB of VMEM, comfortably inside the default scoped VMEM on
# v5e (16 MiB) / v6e (32 MiB) / v7x (32 MiB), and each step moves ~3 MiB of
# HBM so the ~0.35 us per-step overhead is well amortized.
DEFAULT_BLOCK_SUBLANES = 512


def _round_up(n, m):
    return ((n + m - 1) // m) * m


def mlp_kernel(w1_ref, b1_ref, w2_ref, b2_ref, x_ref, o_ref):
    """Feature-major MLP tile.

    x_ref : [6,  TBS, 128] f32 VMEM   (batch on sublanes x lanes)
    o_ref : [6,  TBS, 128] f32 VMEM
    w1_ref: [6, 12] f32 SMEM, b1_ref: [12] f32 SMEM
    w2_ref: [12, 6] f32 SMEM, b2_ref: [6]  f32 SMEM
    """
    xs = [x_ref[i] for i in range(IN_DIM)]          # 6 x [TBS, 128]

    # Layer 1: Linear(6, 12) + ReLU as unrolled scalar-broadcast FMAs.
    hs = []
    for o in range(HID_DIM):
        acc = xs[0] * w1_ref[0, o]
        for i in range(1, IN_DIM):
            acc = acc + xs[i] * w1_ref[i, o]
        hs.append(jnp.maximum(acc + b1_ref[o], 0.0))

    # Layer 2: Linear(12, 6) + Sigmoid (exp goes to the EUP slot).
    for j in range(OUT_DIM):
        acc = hs[0] * w2_ref[0, j]
        for o in range(1, HID_DIM):
            acc = acc + hs[o] * w2_ref[o, j]
        o_ref[j] = jax.nn.sigmoid(acc + b2_ref[j]).astype(o_ref.dtype)


def my_mlp_forward(x, w1, b1, w2, b2, *, block_sublanes=DEFAULT_BLOCK_SUBLANES):
    """x: [B, 6] f32 -> [B, 6] f32 == sigmoid(relu(x @ w1 + b1) @ w2 + b2)."""
    B = x.shape[0]
    assert x.shape[1] == IN_DIM

    # Batch tile: TBS sublane rows x 128 lanes of batch elements per grid step.
    sub_needed = _round_up(-(-B // LANES), 8)                 # ceil(B/128) -> mult of 8
    tbs = max(8, min(_round_up(block_sublanes, 8), sub_needed))
    tile = tbs * LANES
    Bp = _round_up(B, tile)

    # Wrapper-side layout plumbing: feature-major, batch packed densely onto
    # sublanes x lanes.  Zero-padded rows compute finite junk and are sliced off.
    xt = jnp.transpose(x)                                     # [6, B]
    if Bp != B:
        xt = jnp.pad(xt, ((0, 0), (0, Bp - B)))
    xt = xt.reshape(IN_DIM, Bp // LANES, LANES)

    grid = (Bp // tile,)

    weight_bytes = 4 * (IN_DIM * HID_DIM + HID_DIM + HID_DIM * OUT_DIM + OUT_DIM)
    cost = pl.CostEstimate(
        flops=2 * Bp * (IN_DIM * HID_DIM + HID_DIM * OUT_DIM),
        transcendentals=Bp * OUT_DIM,                         # sigmoid
        bytes_accessed=Bp * (IN_DIM + OUT_DIM) * 4 + weight_bytes,
    )

    smem = pl.BlockSpec(memory_space=pltpu.MemorySpace.SMEM)  # whole array, resident
    out = pl.pallas_call(
        mlp_kernel,
        out_shape=jax.ShapeDtypeStruct((OUT_DIM, Bp // LANES, LANES), jnp.float32),
        grid=grid,
        in_specs=[
            smem,                                             # w1 [6, 12]
            smem,                                             # b1 [12]
            smem,                                             # w2 [12, 6]
            smem,                                             # b2 [6]
            pl.BlockSpec((IN_DIM, tbs, LANES), lambda i: (0, i, 0)),
        ],
        out_specs=pl.BlockSpec((OUT_DIM, tbs, LANES), lambda i: (0, i, 0)),
        compiler_params=pltpu.CompilerParams(
            # Batch tiles are independent -> shard across TCs on v7x megacore.
            dimension_semantics=("parallel",),
        ),
        cost_estimate=cost,
    )(w1, b1, w2, b2, xt)

    out = out.reshape(OUT_DIM, Bp)[:, :B]
    return jnp.transpose(out)                                 # [B, 6]


def init_params(key):
    """Deterministic init mirroring torch.nn.Linear defaults:
    U(-1/sqrt(fan_in), 1/sqrt(fan_in)) for both weight and bias.
    Weights stored transposed vs PyTorch so y = x @ w + b matches
    torch's x @ weight.T + bias exactly."""
    k1, k2, k3, k4 = jax.random.split(key, 4)
    bound1 = 1.0 / jnp.sqrt(float(IN_DIM))
    bound2 = 1.0 / jnp.sqrt(float(HID_DIM))
    w1 = jax.random.uniform(k1, (IN_DIM, HID_DIM), jnp.float32, -bound1, bound1)
    b1 = jax.random.uniform(k2, (HID_DIM,), jnp.float32, -bound1, bound1)
    w2 = jax.random.uniform(k3, (HID_DIM, OUT_DIM), jnp.float32, -bound2, bound2)
    b2 = jax.random.uniform(k4, (OUT_DIM,), jnp.float32, -bound2, bound2)
    return w1, b1, w2, b2


if __name__ == "__main__":
    key = jax.random.PRNGKey(0)
    kx1, kx2, kp = jax.random.split(key, 3)

    w1, b1, w2, b2 = init_params(kp)

    def ref_fn(x):
        return jax.nn.sigmoid(jnp.maximum(x @ w1 + b1, 0.0) @ w2 + b2)

    # Case 1: small unaligned batch, single grid step (heavy padding path).
    B1 = 37
    x1 = jax.random.normal(kx1, (B1, IN_DIM), jnp.float32)
    out1 = jax.block_until_ready(my_mlp_forward(x1, w1, b1, w2, b2))
    assert out1.shape == (B1, OUT_DIM)
    assert jnp.allclose(out1, ref_fn(x1), atol=1e-5, rtol=1e-5)

    # Case 2: multi-step grid with a partially filled last tile
    # (block_sublanes=8 -> 1024 rows per step -> grid of 3 steps).
    B2 = 2500
    x2 = jax.random.normal(kx2, (B2, IN_DIM), jnp.float32)
    out2 = jax.block_until_ready(
        my_mlp_forward(x2, w1, b1, w2, b2, block_sublanes=8))
    assert out2.shape == (B2, OUT_DIM)
    assert jnp.allclose(out2, ref_fn(x2), atol=1e-5, rtol=1e-5)

    print("KERNEL_OK")
</pallas_src>

<mosaic_0001>
module attributes {stable_mosaic.version = 11 : i64} {
  func.func @mlp_kernel(%arg0: i32, %arg1: memref<6x12xf32, #tpu.memory_space<smem>>, %arg2: memref<12xf32, #tpu.memory_space<smem>>, %arg3: memref<12x6xf32, #tpu.memory_space<smem>>, %arg4: memref<6xf32, #tpu.memory_space<smem>>, %arg5: memref<6x8x128xf32, #tpu.memory_space<vmem>>, %arg6: memref<6x8x128xf32, #tpu.memory_space<vmem>>) attributes {dimension_semantics = [#tpu.dimension_semantics<parallel>], iteration_bounds = array<i64: 1>, scalar_prefetch = 0 : i64, scratch_operands = 0 : i64, tpu.core_type = #tpu.core_type<tc>, window_params = [{transform_indices = @transform_0, window_bounds = array<i64: 6, 12>}, {transform_indices = @transform_1, window_bounds = array<i64: 12>}, {transform_indices = @transform_2, window_bounds = array<i64: 12, 6>}, {transform_indices = @transform_3, window_bounds = array<i64: 6>}, {transform_indices = @transform_4, window_bounds = array<i64: 6, 8, 128>}, {transform_indices = @transform_5, window_bounds = array<i64: 6, 8, 128>}]} {
    %c0 = arith.constant 0 : index
    %c0_0 = arith.constant 0 : index
    %c0_1 = arith.constant 0 : index
    %0 = vector.load %arg5[%c0, %c0_0, %c0_1] : memref<6x8x128xf32, #tpu.memory_space<vmem>>, vector<1x8x128xf32>
    %1 = vector.shape_cast %0 : vector<1x8x128xf32> to vector<8x128xf32>
    %c1 = arith.constant 1 : index
    %c0_2 = arith.constant 0 : index
    %c0_3 = arith.constant 0 : index
    %2 = vector.load %arg5[%c1, %c0_2, %c0_3] : memref<6x8x128xf32, #tpu.memory_space<vmem>>, vector<1x8x128xf32>
    %3 = vector.shape_cast %2 : vector<1x8x128xf32> to vector<8x128xf32>
    %c2 = arith.constant 2 : index
    %c0_4 = arith.constant 0 : index
    %c0_5 = arith.constant 0 : index
    %4 = vector.load %arg5[%c2, %c0_4, %c0_5] : memref<6x8x128xf32, #tpu.memory_space<vmem>>, vector<1x8x128xf32>
    %5 = vector.shape_cast %4 : vector<1x8x128xf32> to vector<8x128xf32>
    %c3 = arith.constant 3 : index
    %c0_6 = arith.constant 0 : index
    %c0_7 = arith.constant 0 : index
    %6 = vector.load %arg5[%c3, %c0_6, %c0_7] : memref<6x8x128xf32, #tpu.memory_space<vmem>>, vector<1x8x128xf32>
    %7 = vector.shape_cast %6 : vector<1x8x128xf32> to vector<8x128xf32>
    %c4 = arith.constant 4 : index
    %c0_8 = arith.constant 0 : index
    %c0_9 = arith.constant 0 : index
    %8 = vector.load %arg5[%c4, %c0_8, %c0_9] : memref<6x8x128xf32, #tpu.memory_space<vmem>>, vector<1x8x128xf32>
    %9 = vector.shape_cast %8 : vector<1x8x128xf32> to vector<8x128xf32>
    %c5 = arith.constant 5 : index
    %c0_10 = arith.constant 0 : index
    %c0_11 = arith.constant 0 : index
    %10 = vector.load %arg5[%c5, %c0_10, %c0_11] : memref<6x8x128xf32, #tpu.memory_space<vmem>>, vector<1x8x128xf32>
    %11 = vector.shape_cast %10 : vector<1x8x128xf32> to vector<8x128xf32>
    %c0_12 = arith.constant 0 : index
    %c0_13 = arith.constant 0 : index
    %12 = memref.load %arg1[%c0_12, %c0_13] : memref<6x12xf32, #tpu.memory_space<smem>>
    %13 = vector.broadcast %12 : f32 to vector<8x128xf32>
    %14 = arith.mulf %1, %13 : vector<8x128xf32>
    %c1_14 = arith.constant 1 : index
    %c0_15 = arith.constant 0 : index
    %15 = memref.load %arg1[%c1_14, %c0_15] : memref<6x12xf32, #tpu.memory_space<smem>>
    %16 = vector.broadcast %15 : f32 to vector<8x128xf32>
    %17 = arith.mulf %3, %16 : vector<8x128xf32>
    %18 = arith.addf %14, %17 : vector<8x128xf32>
    %c2_16 = arith.constant 2 : index
    %c0_17 = arith.constant 0 : index
    %19 = memref.load %arg1[%c2_16, %c0_17] : memref<6x12xf32, #tpu.memory_space<smem>>
    %20 = vector.broadcast %19 : f32 to vector<8x128xf32>
    %21 = arith.mulf %5, %20 : vector<8x128xf32>
    %22 = arith.addf %18, %21 : vector<8x128xf32>
    %c3_18 = arith.constant 3 : index
    %c0_19 = arith.constant 0 : index
    %23 = memref.load %arg1[%c3_18, %c0_19] : memref<6x12xf32, #tpu.memory_space<smem>>
    %24 = vector.broadcast %23 : f32 to vector<8x128xf32>
    %25 = arith.mulf %7, %24 : vector<8x128xf32>
    %26 = arith.addf %22, %25 : vector<8x128xf32>
    %c4_20 = arith.constant 4 : index
    %c0_21 = arith.constant 0 : index
    %27 = memref.load %arg1[%c4_20, %c0_21] : memref<6x12xf32, #tpu.memory_space<smem>>
    %28 = vector.broadcast %27 : f32 to vector<8x128xf32>
    %29 = arith.mulf %9, %28 : vector<8x128xf32>
    %30 = arith.addf %26, %29 : vector<8x128xf32>
    %c5_22 = arith.constant 5 : index
    %c0_23 = arith.constant 0 : index
    %31 = memref.load %arg1[%c5_22, %c0_23] : memref<6x12xf32, #tpu.memory_space<smem>>
    %32 = vector.broadcast %31 : f32 to vector<8x128xf32>
    %33 = arith.mulf %11, %32 : vector<8x128xf32>
    %34 = arith.addf %30, %33 : vector<8x128xf32>
    %c0_24 = arith.constant 0 : index
    %35 = memref.load %arg2[%c0_24] : memref<12xf32, #tpu.memory_space<smem>>
    %36 = vector.broadcast %35 : f32 to vector<8x128xf32>
    %37 = arith.addf %34, %36 : vector<8x128xf32>
    %cst = arith.constant 0.000000e+00 : f32
    %38 = vector.broadcast %cst : f32 to vector<8x128xf32>
    %39 = arith.maximumf %37, %38 : vector<8x128xf32>
    %c0_25 = arith.constant 0 : index
    %c1_26 = arith.constant 1 : index
    %40 = memref.load %arg1[%c0_25, %c1_26] : memref<6x12xf32, #tpu.memory_space<smem>>
    %41 = vector.broadcast %40 : f32 to vector<8x128xf32>
    %42 = arith.mulf %1, %41 : vector<8x128xf32>
    %c1_27 = arith.constant 1 : index
    %c1_28 = arith.constant 1 : index
    %43 = memref.load %arg1[%c1_27, %c1_28] : memref<6x12xf32, #tpu.memory_space<smem>>
    %44 = vector.broadcast %43 : f32 to vector<8x128xf32>
    %45 = arith.mulf %3, %44 : vector<8x128xf32>
    %46 = arith.addf %42, %45 : vector<8x128xf32>
    %c2_29 = arith.constant 2 : index
    %c1_30 = arith.constant 1 : index
    %47 = memref.load %arg1[%c2_29, %c1_30] : memref<6x12xf32, #tpu.memory_space<smem>>
    %48 = vector.broadcast %47 : f32 to vector<8x128xf32>
    %49 = arith.mulf %5, %48 : vector<8x128xf32>
    %50 = arith.addf %46, %49 : vector<8x128xf32>
    %c3_31 = arith.constant 3 : index
    %c1_32 = arith.constant 1 : index
    %51 = memref.load %arg1[%c3_31, %c1_32] : memref<6x12xf32, #tpu.memory_space<smem>>
    %52 = vector.broadcast %51 : f32 to vector<8x128xf32>
    %53 = arith.mulf %7, %52 : vector<8x128xf32>
    %54 = arith.addf %50, %53 : vector<8x128xf32>
    %c4_33 = arith.constant 4 : index
    %c1_34 = arith.constant 1 : index
    %55 = memref.load %arg1[%c4_33, %c1_34] : memref<6x12xf32, #tpu.memory_space<smem>>
    %56 = vector.broadcast %55 : f32 to vector<8x128xf32>
    %57 = arith.mulf %9, %56 : vector<8x128xf32>
    %58 = arith.addf %54, %57 : vector<8x128xf32>
    %c5_35 = arith.constant 5 : index
    %c1_36 = arith.constant 1 : index
    %59 = memref.load %arg1[%c5_35, %c1_36] : memref<6x12xf32, #tpu.memory_space<smem>>
    %60 = vector.broadcast %59 : f32 to vector<8x128xf32>
    %61 = arith.mulf %11, %60 : vector<8x128xf32>
    %62 = arith.addf %58, %61 : vector<8x128xf32>
    %c1_37 = arith.constant 1 : index
    %63 = memref.load %arg2[%c1_37] : memref<12xf32, #tpu.memory_space<smem>>
    %64 = vector.broadcast %63 : f32 to vector<8x128xf32>
    %65 = arith.addf %62, %64 : vector<8x128xf32>
    %cst_38 = arith.constant 0.000000e+00 : f32
    %66 = vector.broadcast %cst_38 : f32 to vector<8x128xf32>
    %67 = arith.maximumf %65, %66 : vector<8x128xf32>
    %c0_39 = arith.constant 0 : index
    %c2_40 = arith.constant 2 : index
    %68 = memref.load %arg1[%c0_39, %c2_40] : memref<6x12xf32, #tpu.memory_space<smem>>
    %69 = vector.broadcast %68 : f32 to vector<8x128xf32>
    %70 = arith.mulf %1, %69 : vector<8x128xf32>
    %c1_41 = arith.constant 1 : index
    %c2_42 = arith.constant 2 : index
    %71 = memref.load %arg1[%c1_41, %c2_42] : memref<6x12xf32, #tpu.memory_space<smem>>
    %72 = vector.broadcast %71 : f32 to vector<8x128xf32>
    %73 = arith.mulf %3, %72 : vector<8x128xf32>
    %74 = arith.addf %70, %73 : vector<8x128xf32>
    %c2_43 = arith.constant 2 : index
    %c2_44 = arith.constant 2 : index
    %75 = memref.load %arg1[%c2_43, %c2_44] : memref<6x12xf32, #tpu.memory_space<smem>>
    %76 = vector.broadcast %75 : f32 to vector<8x128xf32>
    %77 = arith.mulf %5, %76 : vector<8x128xf32>
    %78 = arith.addf %74, %77 : vector<8x128xf32>
    %c3_45 = arith.constant 3 : index
    %c2_46 = arith.constant 2 : index
    %79 = memref.load %arg1[%c3_45, %c2_46] : memref<6x12xf32, #tpu.memory_space<smem>>
    %80 = vector.broadcast %79 : f32 to vector<8x128xf32>
    %81 = arith.mulf %7, %80 : vector<8x128xf32>
    %82 = arith.addf %78, %81 : vector<8x128xf32>
    %c4_47 = arith.constant 4 : index
    %c2_48 = arith.constant 2 : index
    %83 = memref.load %arg1[%c4_47, %c2_48] : memref<6x12xf32, #tpu.memory_space<smem>>
    %84 = vector.broadcast %83 : f32 to vector<8x128xf32>
    %85 = arith.mulf %9, %84 : vector<8x128xf32>
    %86 = arith.addf %82, %85 : vector<8x128xf32>
    %c5_49 = arith.constant 5 : index
    %c2_50 = arith.constant 2 : index
    %87 = memref.load %arg1[%c5_49, %c2_50] : memref<6x12xf32, #tpu.memory_space<smem>>
    %88 = vector.broadcast %87 : f32 to vector<8x128xf32>
    %89 = arith.mulf %11, %88 : vector<8x128xf32>
    %90 = arith.addf %86, %89 : vector<8x128xf32>
    %c2_51 = arith.constant 2 : index
    %91 = memref.load %arg2[%c2_51] : memref<12xf32, #tpu.memory_space<smem>>
    %92 = vector.broadcast %91 : f32 to vector<8x128xf32>
    %93 = arith.addf %90, %92 : vector<8x128xf32>
    %cst_52 = arith.constant 0.000000e+00 : f32
    %94 = vector.broadcast %cst_52 : f32 to vector<8x128xf32>
    %95 = arith.maximumf %93, %94 : vector<8x128xf32>
    %c0_53 = arith.constant 0 : index
    %c3_54 = arith.constant 3 : index
    %96 = memref.load %arg1[%c0_53, %c3_54] : memref<6x12xf32, #tpu.memory_space<smem>>
    %97 = vector.broadcast %96 : f32 to vector<8x128xf32>
    %98 = arith.mulf %1, %97 : vector<8x128xf32>
    %c1_55 = arith.constant 1 : index
    %c3_56 = arith.constant 3 : index
    %99 = memref.load %arg1[%c1_55, %c3_56] : memref<6x12xf32, #tpu.memory_space<smem>>
    %100 = vector.broadcast %99 : f32 to vector<8x128xf32>
    %101 = arith.mulf %3, %100 : vector<8x128xf32>
    %102 = arith.addf %98, %101 : vector<8x128xf32>
    %c2_57 = arith.constant 2 : index
    %c3_58 = arith.constant 3 : index
    %103 = memref.load %arg1[%c2_57, %c3_58] : memref<6x12xf32, #tpu.memory_space<smem>>
    %104 = vector.broadcast %103 : f32 to vector<8x128xf32>
    %105 = arith.mulf %5, %104 : vector<8x128xf32>
    %106 = arith.addf %102, %105 : vector<8x128xf32>
    %c3_59 = arith.constant 3 : index
    %c3_60 = arith.constant 3 : index
    %107 = memref.load %arg1[%c3_59, %c3_60] : memref<6x12xf32, #tpu.memory_space<smem>>
    %108 = vector.broadcast %107 : f32 to vector<8x128xf32>
    %109 = arith.mulf %7, %108 : vector<8x128xf32>
    %110 = arith.addf %106, %109 : vector<8x128xf32>
    %c4_61 = arith.constant 4 : index
    %c3_62 = arith.constant 3 : index
    %111 = memref.load %arg1[%c4_61, %c3_62] : memref<6x12xf32, #tpu.memory_space<smem>>
    %112 = vector.broadcast %111 : f32 to vector<8x128xf32>
    %113 = arith.mulf %9, %112 : vector<8x128xf32>
    %114 = arith.addf %110, %113 : vector<8x128xf32>
    %c5_63 = arith.constant 5 : index
    %c3_64 = arith.constant 3 : index
    %115 = memref.load %arg1[%c5_63, %c3_64] : memref<6x12xf32, #tpu.memory_space<smem>>
    %116 = vector.broadcast %115 : f32 to vector<8x128xf32>
    %117 = arith.mulf %11, %116 : vector<8x128xf32>
    %118 = arith.addf %114, %117 : vector<8x128xf32>
    %c3_65 = arith.constant 3 : index
    %119 = memref.load %arg2[%c3_65] : memref<12xf32, #tpu.memory_space<smem>>
    %120 = vector.broadcast %119 : f32 to vector<8x128xf32>
    %121 = arith.addf %118, %120 : vector<8x128xf32>
    %cst_66 = arith.constant 0.000000e+00 : f32
    %122 = vector.broadcast %cst_66 : f32 to vector<8x128xf32>
    %123 = arith.maximumf %121, %122 : vector<8x128xf32>
    %c0_67 = arith.constant 0 : index
    %c4_68 = arith.constant 4 : index
    %124 = memref.load %arg1[%c0_67, %c4_68] : memref<6x12xf32, #tpu.memory_space<smem>>
    %125 = vector.broadcast %124 : f32 to vector<8x128xf32>
    %126 = arith.mulf %1, %125 : vector<8x128xf32>
    %c1_69 = arith.constant 1 : index
    %c4_70 = arith.constant 4 : index
    %127 = memref.load %arg1[%c1_69, %c4_70] : memref<6x12xf32, #tpu.memory_space<smem>>
    %128 = vector.broadcast %127 : f32 to vector<8x128xf32>
    %129 = arith.mulf %3, %128 : vector<8x128xf32>
    %130 = arith.addf %126, %129 : vector<8x128xf32>
    %c2_71 = arith.constant 2 : index
    %c4_72 = arith.constant 4 : index
    %131 = memref.load %arg1[%c2_71, %c4_72] : memref<6x12xf32, #tpu.memory_space<smem>>
    %132 = vector.broadcast %131 : f32 to vector<8x128xf32>
    %133 = arith.mulf %5, %132 : vector<8x128xf32>
    %134 = arith.addf %130, %133 : vector<8x128xf32>
    %c3_73 = arith.constant 3 : index
    %c4_74 = arith.constant 4 : index
    %135 = memref.load %arg1[%c3_73, %c4_74] : memref<6x12xf32, #tpu.memory_space<smem>>
    %136 = vector.broadcast %135 : f32 to vector<8x128xf32>
    %137 = arith.mulf %7, %136 : vector<8x128xf32>
    %138 = arith.addf %134, %137 : vector<8x128xf32>
    %c4_75 = arith.constant 4 : index
    %c4_76 = arith.constant 4 : index
    %139 = memref.load %arg1[%c4_75, %c4_76] : memref<6x12xf32, #tpu.memory_space<smem>>
    %140 = vector.broadcast %139 : f32 to vector<8x128xf32>
    %141 = arith.mulf %9, %140 : vector<8x128xf32>
    %142 = arith.addf %138, %141 : vector<8x128xf32>
    %c5_77 = arith.constant 5 : index
    %c4_78 = arith.constant 4 : index
    %143 = memref.load %arg1[%c5_77, %c4_78] : memref<6x12xf32, #tpu.memory_space<smem>>
    %144 = vector.broadcast %143 : f32 to vector<8x128xf32>
    %145 = arith.mulf %11, %144 : vector<8x128xf32>
    %146 = arith.addf %142, %145 : vector<8x128xf32>
    %c4_79 = arith.constant 4 : index
    %147 = memref.load %arg2[%c4_79] : memref<12xf32, #tpu.memory_space<smem>>
    %148 = vector.broadcast %147 : f32 to vector<8x128xf32>
    %149 = arith.addf %146, %148 : vector<8x128xf32>
    %cst_80 = arith.constant 0.000000e+00 : f32
    %150 = vector.broadcast %cst_80 : f32 to vector<8x128xf32>
    %151 = arith.maximumf %149, %150 : vector<8x128xf32>
    %c0_81 = arith.constant 0 : index
    %c5_82 = arith.constant 5 : index
    %152 = memref.load %arg1[%c0_81, %c5_82] : memref<6x12xf32, #tpu.memory_space<smem>>
    %153 = vector.broadcast %152 : f32 to vector<8x128xf32>
    %154 = arith.mulf %1, %153 : vector<8x128xf32>
    %c1_83 = arith.constant 1 : index
    %c5_84 = arith.constant 5 : index
    %155 = memref.load %arg1[%c1_83, %c5_84] : memref<6x12xf32, #tpu.memory_space<smem>>
    %156 = vector.broadcast %155 : f32 to vector<8x128xf32>
    %157 = arith.mulf %3, %156 : vector<8x128xf32>
    %158 = arith.addf %154, %157 : vector<8x128xf32>
    %c2_85 = arith.constant 2 : index
    %c5_86 = arith.constant 5 : index
    %159 = memref.load %arg1[%c2_85, %c5_86] : memref<6x12xf32, #tpu.memory_space<smem>>
    %160 = vector.broadcast %159 : f32 to vector<8x128xf32>
    %161 = arith.mulf %5, %160 : vector<8x128xf32>
    %162 = arith.addf %158, %161 : vector<8x128xf32>
    %c3_87 = arith.constant 3 : index
    %c5_88 = arith.constant 5 : index
    %163 = memref.load %arg1[%c3_87, %c5_88] : memref<6x12xf32, #tpu.memory_space<smem>>
    %164 = vector.broadcast %163 : f32 to vector<8x128xf32>
    %165 = arith.mulf %7, %164 : vector<8x128xf32>
    %166 = arith.addf %162, %165 : vector<8x128xf32>
    %c4_89 = arith.constant 4 : index
    %c5_90 = arith.constant 5 : index
    %167 = memref.load %arg1[%c4_89, %c5_90] : memref<6x12xf32, #tpu.memory_space<smem>>
    %168 = vector.broadcast %167 : f32 to vector<8x128xf32>
    %169 = arith.mulf %9, %168 : vector<8x128xf32>
    %170 = arith.addf %166, %169 : vector<8x128xf32>
    %c5_91 = arith.constant 5 : index
    %c5_92 = arith.constant 5 : index
    %171 = memref.load %arg1[%c5_91, %c5_92] : memref<6x12xf32, #tpu.memory_space<smem>>
    %172 = vector.broadcast %171 : f32 to vector<8x128xf32>
    %173 = arith.mulf %11, %172 : vector<8x128xf32>
    %174 = arith.addf %170, %173 : vector<8x128xf32>
    %c5_93 = arith.constant 5 : index
    %175 = memref.load %arg2[%c5_93] : memref<12xf32, #tpu.memory_space<smem>>
    %176 = vector.broadcast %175 : f32 to vector<8x128xf32>
    %177 = arith.addf %174, %176 : vector<8x128xf32>
    %cst_94 = arith.constant 0.000000e+00 : f32
    %178 = vector.broadcast %cst_94 : f32 to vector<8x128xf32>
    %179 = arith.maximumf %177, %178 : vector<8x128xf32>
    %c0_95 = arith.constant 0 : index
    %c6 = arith.constant 6 : index
    %180 = memref.load %arg1[%c0_95, %c6] : memref<6x12xf32, #tpu.memory_space<smem>>
    %181 = vector.broadcast %180 : f32 to vector<8x128xf32>
    %182 = arith.mulf %1, %181 : vector<8x128xf32>
    %c1_96 = arith.constant 1 : index
    %c6_97 = arith.constant 6 : index
    %183 = memref.load %arg1[%c1_96, %c6_97] : memref<6x12xf32, #tpu.memory_space<smem>>
    %184 = vector.broadcast %183 : f32 to vector<8x128xf32>
    %185 = arith.mulf %3, %184 : vector<8x128xf32>
    %186 = arith.addf %182, %185 : vector<8x128xf32>
    %c2_98 = arith.constant 2 : index
    %c6_99 = arith.constant 6 : index
    %187 = memref.load %arg1[%c2_98, %c6_99] : memref<6x12xf32, #tpu.memory_space<smem>>
    %188 = vector.broadcast %187 : f32 to vector<8x128xf32>
    %189 = arith.mulf %5, %188 : vector<8x128xf32>
    %190 = arith.addf %186, %189 : vector<8x128xf32>
    %c3_100 = arith.constant 3 : index
    %c6_101 = arith.constant 6 : index
    %191 = memref.load %arg1[%c3_100, %c6_101] : memref<6x12xf32, #tpu.memory_space<smem>>
    %192 = vector.broadcast %191 : f32 to vector<8x128xf32>
    %193 = arith.mulf %7, %192 : vector<8x128xf32>
    %194 = arith.addf %190, %193 : vector<8x128xf32>
    %c4_102 = arith.constant 4 : index
    %c6_103 = arith.constant 6 : index
    %195 = memref.load %arg1[%c4_102, %c6_103] : memref<6x12xf32, #tpu.memory_space<smem>>
    %196 = vector.broadcast %195 : f32 to vector<8x128xf32>
    %197 = arith.mulf %9, %196 : vector<8x128xf32>
    %198 = arith.addf %194, %197 : vector<8x128xf32>
    %c5_104 = arith.constant 5 : index
    %c6_105 = arith.constant 6 : index
    %199 = memref.load %arg1[%c5_104, %c6_105] : memref<6x12xf32, #tpu.memory_space<smem>>
    %200 = vector.broadcast %199 : f32 to vector<8x128xf32>
    %201 = arith.mulf %11, %200 : vector<8x128xf32>
    %202 = arith.addf %198, %201 : vector<8x128xf32>
    %c6_106 = arith.constant 6 : index
    %203 = memref.load %arg2[%c6_106] : memref<12xf32, #tpu.memory_space<smem>>
    %204 = vector.broadcast %203 : f32 to vector<8x128xf32>
    %205 = arith.addf %202, %204 : vector<8x128xf32>
    %cst_107 = arith.constant 0.000000e+00 : f32
    %206 = vector.broadcast %cst_107 : f32 to vector<8x128xf32>
    %207 = arith.maximumf %205, %206 : vector<8x128xf32>
    %c0_108 = arith.constant 0 : index
    %c7 = arith.constant 7 : index
    %208 = memref.load %arg1[%c0_108, %c7] : memref<6x12xf32, #tpu.memory_space<smem>>
    %209 = vector.broadcast %208 : f32 to vector<8x128xf32>
    %210 = arith.mulf %1, %209 : vector<8x128xf32>
    %c1_109 = arith.constant 1 : index
    %c7_110 = arith.constant 7 : index
    %211 = memref.load %arg1[%c1_109, %c7_110] : memref<6x12xf32, #tpu.memory_space<smem>>
    %212 = vector.broadcast %211 : f32 to vector<8x128xf32>
    %213 = arith.mulf %3, %212 : vector<8x128xf32>
    %214 = arith.addf %210, %213 : vector<8x128xf32>
    %c2_111 = arith.constant 2 : index
    %c7_112 = arith.constant 7 : index
    %215 = memref.load %arg1[%c2_111, %c7_112] : memref<6x12xf32, #tpu.memory_space<smem>>
    %216 = vector.broadcast %215 : f32 to vector<8x128xf32>
    %217 = arith.mulf %5, %216 : vector<8x128xf32>
    %218 = arith.addf %214, %217 : vector<8x128xf32>
    %c3_113 = arith.constant 3 : index
    %c7_114 = arith.constant 7 : index
    %219 = memref.load %arg1[%c3_113, %c7_114] : memref<6x12xf32, #tpu.memory_space<smem>>
    %220 = vector.broadcast %219 : f32 to vector<8x128xf32>
    %221 = arith.mulf %7, %220 : vector<8x128xf32>
    %222 = arith.addf %218, %221 : vector<8x128xf32>
    %c4_115 = arith.constant 4 : index
    %c7_116 = arith.constant 7 : index
    %223 = memref.load %arg1[%c4_115, %c7_116] : memref<6x12xf32, #tpu.memory_space<smem>>
    %224 = vector.broadcast %223 : f32 to vector<8x128xf32>
    %225 = arith.mulf %9, %224 : vector<8x128xf32>
    %226 = arith.addf %222, %225 : vector<8x128xf32>
    %c5_117 = arith.constant 5 : index
    %c7_118 = arith.constant 7 : index
    %227 = memref.load %arg1[%c5_117, %c7_118] : memref<6x12xf32, #tpu.memory_space<smem>>
    %228 = vector.broadcast %227 : f32 to vector<8x128xf32>
    %229 = arith.mulf %11, %228 : vector<8x128xf32>
    %230 = arith.addf %226, %229 : vector<8x128xf32>
    %c7_119 = arith.constant 7 : index
    %231 = memref.load %arg2[%c7_119] : memref<12xf32, #tpu.memory_space<smem>>
    %232 = vector.broadcast %231 : f32 to vector<8x128xf32>
    %233 = arith.addf %230, %232 : vector<8x128xf32>
    %cst_120 = arith.constant 0.000000e+00 : f32
    %234 = vector.broadcast %cst_120 : f32 to vector<8x128xf32>
    %235 = arith.maximumf %233, %234 : vector<8x128xf32>
    %c0_121 = arith.constant 0 : index
    %c8 = arith.constant 8 : index
    %236 = memref.load %arg1[%c0_121, %c8] : memref<6x12xf32, #tpu.memory_space<smem>>
    %237 = vector.broadcast %236 : f32 to vector<8x128xf32>
    %238 = arith.mulf %1, %237 : vector<8x128xf32>
    %c1_122 = arith.constant 1 : index
    %c8_123 = arith.constant 8 : index
    %239 = memref.load %arg1[%c1_122, %c8_123] : memref<6x12xf32, #tpu.memory_space<smem>>
    %240 = vector.broadcast %239 : f32 to vector<8x128xf32>
    %241 = arith.mulf %3, %240 : vector<8x128xf32>
    %242 = arith.addf %238, %241 : vector<8x128xf32>
    %c2_124 = arith.constant 2 : index
    %c8_125 = arith.constant 8 : index
    %243 = memref.load %arg1[%c2_124, %c8_125] : memref<6x12xf32, #tpu.memory_space<smem>>
    %244 = vector.broadcast %243 : f32 to vector<8x128xf32>
    %245 = arith.mulf %5, %244 : vector<8x128xf32>
    %246 = arith.addf %242, %245 : vector<8x128xf32>
    %c3_126 = arith.constant 3 : index
    %c8_127 = arith.constant 8 : index
    %247 = memref.load %arg1[%c3_126, %c8_127] : memref<6x12xf32, #tpu.memory_space<smem>>
    %248 = vector.broadcast %247 : f32 to vector<8x128xf32>
    %249 = arith.mulf %7, %248 : vector<8x128xf32>
    %250 = arith.addf %246, %249 : vector<8x128xf32>
    %c4_128 = arith.constant 4 : index
    %c8_129 = arith.constant 8 : index
    %251 = memref.load %arg1[%c4_128, %c8_129] : memref<6x12xf32, #tpu.memory_space<smem>>
    %252 = vector.broadcast %251 : f32 to vector<8x128xf32>
    %253 = arith.mulf %9, %252 : vector<8x128xf32>
    %254 = arith.addf %250, %253 : vector<8x128xf32>
    %c5_130 = arith.constant 5 : index
    %c8_131 = arith.constant 8 : index
    %255 = memref.load %arg1[%c5_130, %c8_131] : memref<6x12xf32, #tpu.memory_space<smem>>
    %256 = vector.broadcast %255 : f32 to vector<8x128xf32>
    %257 = arith.mulf %11, %256 : vector<8x128xf32>
    %258 = arith.addf %254, %257 : vector<8x128xf32>
    %c8_132 = arith.constant 8 : index
    %259 = memref.load %arg2[%c8_132] : memref<12xf32, #tpu.memory_space<smem>>
    %260 = vector.broadcast %259 : f32 to vector<8x128xf32>
    %261 = arith.addf %258, %260 : vector<8x128xf32>
    %cst_133 = arith.constant 0.000000e+00 : f32
    %262 = vector.broadcast %cst_133 : f32 to vector<8x128xf32>
    %263 = arith.maximumf %261, %262 : vector<8x128xf32>
    %c0_134 = arith.constant 0 : index
    %c9 = arith.constant 9 : index
    %264 = memref.load %arg1[%c0_134, %c9] : memref<6x12xf32, #tpu.memory_space<smem>>
    %265 = vector.broadcast %264 : f32 to vector<8x128xf32>
    %266 = arith.mulf %1, %265 : vector<8x128xf32>
    %c1_135 = arith.constant 1 : index
    %c9_136 = arith.constant 9 : index
    %267 = memref.load %arg1[%c1_135, %c9_136] : memref<6x12xf32, #tpu.memory_space<smem>>
    %268 = vector.broadcast %267 : f32 to vector<8x128xf32>
    %269 = arith.mulf %3, %268 : vector<8x128xf32>
    %270 = arith.addf %266, %269 : vector<8x128xf32>
    %c2_137 = arith.constant 2 : index
    %c9_138 = arith.constant 9 : index
    %271 = memref.load %arg1[%c2_137, %c9_138] : memref<6x12xf32, #tpu.memory_space<smem>>
    %272 = vector.broadcast %271 : f32 to vector<8x128xf32>
    %273 = arith.mulf %5, %272 : vector<8x128xf32>
    %274 = arith.addf %270, %273 : vector<8x128xf32>
    %c3_139 = arith.constant 3 : index
    %c9_140 = arith.constant 9 : index
    %275 = memref.load %arg1[%c3_139, %c9_140] : memref<6x12xf32, #tpu.memory_space<smem>>
    %276 = vector.broadcast %275 : f32 to vector<8x128xf32>
    %277 = arith.mulf %7, %276 : vector<8x128xf32>
    %278 = arith.addf %274, %277 : vector<8x128xf32>
    %c4_141 = arith.constant 4 : index
    %c9_142 = arith.constant 9 : index
    %279 = memref.load %arg1[%c4_141, %c9_142] : memref<6x12xf32, #tpu.memory_space<smem>>
    %280 = vector.broadcast %279 : f32 to vector<8x128xf32>
    %281 = arith.mulf %9, %280 : vector<8x128xf32>
    %282 = arith.addf %278, %281 : vector<8x128xf32>
    %c5_143 = arith.constant 5 : index
    %c9_144 = arith.constant 9 : index
    %283 = memref.load %arg1[%c5_143, %c9_144] : memref<6x12xf32, #tpu.memory_space<smem>>
    %284 = vector.broadcast %283 : f32 to vector<8x128xf32>
    %285 = arith.mulf %11, %284 : vector<8x128xf32>
    %286 = arith.addf %282, %285 : vector<8x128xf32>
    %c9_145 = arith.constant 9 : index
    %287 = memref.load %arg2[%c9_145] : memref<12xf32, #tpu.memory_space<smem>>
    %288 = vector.broadcast %287 : f32 to vector<8x128xf32>
    %289 = arith.addf %286, %288 : vector<8x128xf32>
    %cst_146 = arith.constant 0.000000e+00 : f32
    %290 = vector.broadcast %cst_146 : f32 to vector<8x128xf32>
    %291 = arith.maximumf %289, %290 : vector<8x128xf32>
    %c0_147 = arith.constant 0 : index
    %c10 = arith.constant 10 : index
    %292 = memref.load %arg1[%c0_147, %c10] : memref<6x12xf32, #tpu.memory_space<smem>>
    %293 = vector.broadcast %292 : f32 to vector<8x128xf32>
    %294 = arith.mulf %1, %293 : vector<8x128xf32>
    %c1_148 = arith.constant 1 : index
    %c10_149 = arith.constant 10 : index
    %295 = memref.load %arg1[%c1_148, %c10_149] : memref<6x12xf32, #tpu.memory_space<smem>>
    %296 = vector.broadcast %295 : f32 to vector<8x128xf32>
    %297 = arith.mulf %3, %296 : vector<8x128xf32>
    %298 = arith.addf %294, %297 : vector<8x128xf32>
    %c2_150 = arith.constant 2 : index
    %c10_151 = arith.constant 10 : index
    %299 = memref.load %arg1[%c2_150, %c10_151] : memref<6x12xf32, #tpu.memory_space<smem>>
    %300 = vector.broadcast %299 : f32 to vector<8x128xf32>
    %301 = arith.mulf %5, %300 : vector<8x128xf32>
    %302 = arith.addf %298, %301 : vector<8x128xf32>
    %c3_152 = arith.constant 3 : index
    %c10_153 = arith.constant 10 : index
    %303 = memref.load %arg1[%c3_152, %c10_153] : memref<6x12xf32, #tpu.memory_space<smem>>
    %304 = vector.broadcast %303 : f32 to vector<8x128xf32>
    %305 = arith.mulf %7, %304 : vector<8x128xf32>
    %306 = arith.addf %302, %305 : vector<8x128xf32>
    %c4_154 = arith.constant 4 : index
    %c10_155 = arith.constant 10 : index
    %307 = memref.load %arg1[%c4_154, %c10_155] : memref<6x12xf32, #tpu.memory_space<smem>>
    %308 = vector.broadcast %307 : f32 to vector<8x128xf32>
    %309 = arith.mulf %9, %308 : vector<8x128xf32>
    %310 = arith.addf %306, %309 : vector<8x128xf32>
    %c5_156 = arith.constant 5 : index
    %c10_157 = arith.constant 10 : index
    %311 = memref.load %arg1[%c5_156, %c10_157] : memref<6x12xf32, #tpu.memory_space<smem>>
    %312 = vector.broadcast %311 : f32 to vector<8x128xf32>
    %313 = arith.mulf %11, %312 : vector<8x128xf32>
    %314 = arith.addf %310, %313 : vector<8x128xf32>
    %c10_158 = arith.constant 10 : index
    %315 = memref.load %arg2[%c10_158] : memref<12xf32, #tpu.memory_space<smem>>
    %316 = vector.broadcast %315 : f32 to vector<8x128xf32>
    %317 = arith.addf %314, %316 : vector<8x128xf32>
    %cst_159 = arith.constant 0.000000e+00 : f32
    %318 = vector.broadcast %cst_159 : f32 to vector<8x128xf32>
    %319 = arith.maximumf %317, %318 : vector<8x128xf32>
    %c0_160 = arith.constant 0 : index
    %c11 = arith.constant 11 : index
    %320 = memref.load %arg1[%c0_160, %c11] : memref<6x12xf32, #tpu.memory_space<smem>>
    %321 = vector.broadcast %320 : f32 to vector<8x128xf32>
    %322 = arith.mulf %1, %321 : vector<8x128xf32>
    %c1_161 = arith.constant 1 : index
    %c11_162 = arith.constant 11 : index
    %323 = memref.load %arg1[%c1_161, %c11_162] : memref<6x12xf32, #tpu.memory_space<smem>>
    %324 = vector.broadcast %323 : f32 to vector<8x128xf32>
    %325 = arith.mulf %3, %324 : vector<8x128xf32>
    %326 = arith.addf %322, %325 : vector<8x128xf32>
    %c2_163 = arith.constant 2 : index
    %c11_164 = arith.constant 11 : index
    %327 = memref.load %arg1[%c2_163, %c11_164] : memref<6x12xf32, #tpu.memory_space<smem>>
    %328 = vector.broadcast %327 : f32 to vector<8x128xf32>
    %329 = arith.mulf %5, %328 : vector<8x128xf32>
    %330 = arith.addf %326, %329 : vector<8x128xf32>
    %c3_165 = arith.constant 3 : index
    %c11_166 = arith.constant 11 : index
    %331 = memref.load %arg1[%c3_165, %c11_166] : memref<6x12xf32, #tpu.memory_space<smem>>
    %332 = vector.broadcast %331 : f32 to vector<8x128xf32>
    %333 = arith.mulf %7, %332 : vector<8x128xf32>
    %334 = arith.addf %330, %333 : vector<8x128xf32>
    %c4_167 = arith.constant 4 : index
    %c11_168 = arith.constant 11 : index
    %335 = memref.load %arg1[%c4_167, %c11_168] : memref<6x12xf32, #tpu.memory_space<smem>>
    %336 = vector.broadcast %335 : f32 to vector<8x128xf32>
    %337 = arith.mulf %9, %336 : vector<8x128xf32>
    %338 = arith.addf %334, %337 : vector<8x128xf32>
    %c5_169 = arith.constant 5 : index
    %c11_170 = arith.constant 11 : index
    %339 = memref.load %arg1[%c5_169, %c11_170] : memref<6x12xf32, #tpu.memory_space<smem>>
    %340 = vector.broadcast %339 : f32 to vector<8x128xf32>
    %341 = arith.mulf %11, %340 : vector<8x128xf32>
    %342 = arith.addf %338, %341 : vector<8x128xf32>
    %c11_171 = arith.constant 11 : index
    %343 = memref.load %arg2[%c11_171] : memref<12xf32, #tpu.memory_space<smem>>
    %344 = vector.broadcast %343 : f32 to vector<8x128xf32>
    %345 = arith.addf %342, %344 : vector<8x128xf32>
    %cst_172 = arith.constant 0.000000e+00 : f32
    %346 = vector.broadcast %cst_172 : f32 to vector<8x128xf32>
    %347 = arith.maximumf %345, %346 : vector<8x128xf32>
    %c0_173 = arith.constant 0 : index
    %c0_174 = arith.constant 0 : index
    %348 = memref.load %arg3[%c0_173, %c0_174] : memref<12x6xf32, #tpu.memory_space<smem>>
    %349 = vector.broadcast %348 : f32 to vector<8x128xf32>
    %350 = arith.mulf %39, %349 : vector<8x128xf32>
    %c1_175 = arith.constant 1 : index
    %c0_176 = arith.constant 0 : index
    %351 = memref.load %arg3[%c1_175, %c0_176] : memref<12x6xf32, #tpu.memory_space<smem>>
    %352 = vector.broadcast %351 : f32 to vector<8x128xf32>
    %353 = arith.mulf %67, %352 : vector<8x128xf32>
    %354 = arith.addf %350, %353 : vector<8x128xf32>
    %c2_177 = arith.constant 2 : index
    %c0_178 = arith.constant 0 : index
    %355 = memref.load %arg3[%c2_177, %c0_178] : memref<12x6xf32, #tpu.memory_space<smem>>
    %356 = vector.broadcast %355 : f32 to vector<8x128xf32>
    %357 = arith.mulf %95, %356 : vector<8x128xf32>
    %358 = arith.addf %354, %357 : vector<8x128xf32>
    %c3_179 = arith.constant 3 : index
    %c0_180 = arith.constant 0 : index
    %359 = memref.load %arg3[%c3_179, %c0_180] : memref<12x6xf32, #tpu.memory_space<smem>>
    %360 = vector.broadcast %359 : f32 to vector<8x128xf32>
    %361 = arith.mulf %123, %360 : vector<8x128xf32>
    %362 = arith.addf %358, %361 : vector<8x128xf32>
    %c4_181 = arith.constant 4 : index
    %c0_182 = arith.constant 0 : index
    %363 = memref.load %arg3[%c4_181, %c0_182] : memref<12x6xf32, #tpu.memory_space<smem>>
    %364 = vector.broadcast %363 : f32 to vector<8x128xf32>
    %365 = arith.mulf %151, %364 : vector<8x128xf32>
    %366 = arith.addf %362, %365 : vector<8x128xf32>
    %c5_183 = arith.constant 5 : index
    %c0_184 = arith.constant 0 : index
    %367 = memref.load %arg3[%c5_183, %c0_184] : memref<12x6xf32, #tpu.memory_space<smem>>
    %368 = vector.broadcast %367 : f32 to vector<8x128xf32>
    %369 = arith.mulf %179, %368 : vector<8x128xf32>
    %370 = arith.addf %366, %369 : vector<8x128xf32>
    %c6_185 = arith.constant 6 : index
    %c0_186 = arith.constant 0 : index
    %371 = memref.load %arg3[%c6_185, %c0_186] : memref<12x6xf32, #tpu.memory_space<smem>>
    %372 = vector.broadcast %371 : f32 to vector<8x128xf32>
    %373 = arith.mulf %207, %372 : vector<8x128xf32>
    %374 = arith.addf %370, %373 : vector<8x128xf32>
    %c7_187 = arith.constant 7 : index
    %c0_188 = arith.constant 0 : index
    %375 = memref.load %arg3[%c7_187, %c0_188] : memref<12x6xf32, #tpu.memory_space<smem>>
    %376 = vector.broadcast %375 : f32 to vector<8x128xf32>
    %377 = arith.mulf %235, %376 : vector<8x128xf32>
    %378 = arith.addf %374, %377 : vector<8x128xf32>
    %c8_189 = arith.constant 8 : index
    %c0_190 = arith.constant 0 : index
    %379 = memref.load %arg3[%c8_189, %c0_190] : memref<12x6xf32, #tpu.memory_space<smem>>
    %380 = vector.broadcast %379 : f32 to vector<8x128xf32>
    %381 = arith.mulf %263, %380 : vector<8x128xf32>
    %382 = arith.addf %378, %381 : vector<8x128xf32>
    %c9_191 = arith.constant 9 : index
    %c0_192 = arith.constant 0 : index
    %383 = memref.load %arg3[%c9_191, %c0_192] : memref<12x6xf32, #tpu.memory_space<smem>>
    %384 = vector.broadcast %383 : f32 to vector<8x128xf32>
    %385 = arith.mulf %291, %384 : vector<8x128xf32>
    %386 = arith.addf %382, %385 : vector<8x128xf32>
    %c10_193 = arith.constant 10 : index
    %c0_194 = arith.constant 0 : index
    %387 = memref.load %arg3[%c10_193, %c0_194] : memref<12x6xf32, #tpu.memory_space<smem>>
    %388 = vector.broadcast %387 : f32 to vector<8x128xf32>
    %389 = arith.mulf %319, %388 : vector<8x128xf32>
    %390 = arith.addf %386, %389 : vector<8x128xf32>
    %c11_195 = arith.constant 11 : index
    %c0_196 = arith.constant 0 : index
    %391 = memref.load %arg3[%c11_195, %c0_196] : memref<12x6xf32, #tpu.memory_space<smem>>
    %392 = vector.broadcast %391 : f32 to vector<8x128xf32>
    %393 = arith.mulf %347, %392 : vector<8x128xf32>
    %394 = arith.addf %390, %393 : vector<8x128xf32>
    %c0_197 = arith.constant 0 : index
    %395 = memref.load %arg4[%c0_197] : memref<6xf32, #tpu.memory_space<smem>>
    %396 = vector.broadcast %395 : f32 to vector<8x128xf32>
    %397 = arith.addf %394, %396 : vector<8x128xf32>
    %398 = arith.negf %397 : vector<8x128xf32>
    %399 = math.exp %398 : vector<8x128xf32>
    %cst_198 = arith.constant 1.000000e+00 : f32
    %400 = vector.broadcast %cst_198 : f32 to vector<8x128xf32>
    %401 = arith.addf %400, %399 : vector<8x128xf32>
    %402 = arith.divf %400, %401 : vector<8x128xf32>
    %c0_199 = arith.constant 0 : index
    %c0_200 = arith.constant 0 : index
    %c0_201 = arith.constant 0 : index
    %403 = vector.load %arg6[%c0_199, %c0_200, %c0_201] : memref<6x8x128xf32, #tpu.memory_space<vmem>>, vector<1x8x128xf32>
    %404 = vector.shape_cast %403 : vector<1x8x128xf32> to vector<8x128xf32>
    %405 = vector.shape_cast %402 : vector<8x128xf32> to vector<1x8x128xf32>
    tpu.vector_store %arg6[%c0_199, %c0_200, %c0_201], %405 {strides = array<i32>} : memref<6x8x128xf32, #tpu.memory_space<vmem>>, vector<1x8x128xf32>,
    %c0_202 = arith.constant 0 : index
    %c1_203 = arith.constant 1 : index
    %406 = memref.load %arg3[%c0_202, %c1_203] : memref<12x6xf32, #tpu.memory_space<smem>>
    %407 = vector.broadcast %406 : f32 to vector<8x128xf32>
    %408 = arith.mulf %39, %407 : vector<8x128xf32>
    %c1_204 = arith.constant 1 : index
    %c1_205 = arith.constant 1 : index
    %409 = memref.load %arg3[%c1_204, %c1_205] : memref<12x6xf32, #tpu.memory_space<smem>>
    %410 = vector.broadcast %409 : f32 to vector<8x128xf32>
    %411 = arith.mulf %67, %410 : vector<8x128xf32>
    %412 = arith.addf %408, %411 : vector<8x128xf32>
    %c2_206 = arith.constant 2 : index
    %c1_207 = arith.constant 1 : index
    %413 = memref.load %arg3[%c2_206, %c1_207] : memref<12x6xf32, #tpu.memory_space<smem>>
    %414 = vector.broadcast %413 : f32 to vector<8x128xf32>
    %415 = arith.mulf %95, %414 : vector<8x128xf32>
    %416 = arith.addf %412, %415 : vector<8x128xf32>
    %c3_208 = arith.constant 3 : index
    %c1_209 = arith.constant 1 : index
    %417 = memref.load %arg3[%c3_208, %c1_209] : memref<12x6xf32, #tpu.memory_space<smem>>
    %418 = vector.broadcast %417 : f32 to vector<8x128xf32>
    %419 = arith.mulf %123, %418 : vector<8x128xf32>
    %420 = arith.addf %416, %419 : vector<8x128xf32>
    %c4_210 = arith.constant 4 : index
    %c1_211 = arith.constant 1 : index
    %421 = memref.load %arg3[%c4_210, %c1_211] : memref<12x6xf32, #tpu.memory_space<smem>>
    %422 = vector.broadcast %421 : f32 to vector<8x128xf32>
    %423 = arith.mulf %151, %422 : vector<8x128xf32>
    %424 = arith.addf %420, %423 : vector<8x128xf32>
    %c5_212 = arith.constant 5 : index
    %c1_213 = arith.constant 1 : index
    %425 = memref.load %arg3[%c5_212, %c1_213] : memref<12x6xf32, #tpu.memory_space<smem>>
    %426 = vector.broadcast %425 : f32 to vector<8x128xf32>
    %427 = arith.mulf %179, %426 : vector<8x128xf32>
    %428 = arith.addf %424, %427 : vector<8x128xf32>
    %c6_214 = arith.constant 6 : index
    %c1_215 = arith.constant 1 : index
    %429 = memref.load %arg3[%c6_214, %c1_215] : memref<12x6xf32, #tpu.memory_space<smem>>
    %430 = vector.broadcast %429 : f32 to vector<8x128xf32>
    %431 = arith.mulf %207, %430 : vector<8x128xf32>
    %432 = arith.addf %428, %431 : vector<8x128xf32>
    %c7_216 = arith.constant 7 : index
    %c1_217 = arith.constant 1 : index
    %433 = memref.load %arg3[%c7_216, %c1_217] : memref<12x6xf32, #tpu.memory_space<smem>>
    %434 = vector.broadcast %433 : f32 to vector<8x128xf32>
    %435 = arith.mulf %235, %434 : vector<8x128xf32>
    %436 = arith.addf %432, %435 : vector<8x128xf32>
    %c8_218 = arith.constant 8 : index
    %c1_219 = arith.constant 1 : index
    %437 = memref.load %arg3[%c8_218, %c1_219] : memref<12x6xf32, #tpu.memory_space<smem>>
    %438 = vector.broadcast %437 : f32 to vector<8x128xf32>
    %439 = arith.mulf %263, %438 : vector<8x128xf32>
    %440 = arith.addf %436, %439 : vector<8x128xf32>
    %c9_220 = arith.constant 9 : index
    %c1_221 = arith.constant 1 : index
    %441 = memref.load %arg3[%c9_220, %c1_221] : memref<12x6xf32, #tpu.memory_space<smem>>
    %442 = vector.broadcast %441 : f32 to vector<8x128xf32>
    %443 = arith.mulf %291, %442 : vector<8x128xf32>
    %444 = arith.addf %440, %443 : vector<8x128xf32>
    %c10_222 = arith.constant 10 : index
    %c1_223 = arith.constant 1 : index
    %445 = memref.load %arg3[%c10_222, %c1_223] : memref<12x6xf32, #tpu.memory_space<smem>>
    %446 = vector.broadcast %445 : f32 to vector<8x128xf32>
    %447 = arith.mulf %319, %446 : vector<8x128xf32>
    %448 = arith.addf %444, %447 : vector<8x128xf32>
    %c11_224 = arith.constant 11 : index
    %c1_225 = arith.constant 1 : index
    %449 = memref.load %arg3[%c11_224, %c1_225] : memref<12x6xf32, #tpu.memory_space<smem>>
    %450 = vector.broadcast %449 : f32 to vector<8x128xf32>
    %451 = arith.mulf %347, %450 : vector<8x128xf32>
    %452 = arith.addf %448, %451 : vector<8x128xf32>
    %c1_226 = arith.constant 1 : index
    %453 = memref.load %arg4[%c1_226] : memref<6xf32, #tpu.memory_space<smem>>
    %454 = vector.broadcast %453 : f32 to vector<8x128xf32>
    %455 = arith.addf %452, %454 : vector<8x128xf32>
    %456 = arith.negf %455 : vector<8x128xf32>
    %457 = math.exp %456 : vector<8x128xf32>
    %cst_227 = arith.constant 1.000000e+00 : f32
    %458 = vector.broadcast %cst_227 : f32 to vector<8x128xf32>
    %459 = arith.addf %458, %457 : vector<8x128xf32>
    %460 = arith.divf %458, %459 : vector<8x128xf32>
    %c1_228 = arith.constant 1 : index
    %c0_229 = arith.constant 0 : index
    %c0_230 = arith.constant 0 : index
    %461 = vector.load %arg6[%c1_228, %c0_229, %c0_230] : memref<6x8x128xf32, #tpu.memory_space<vmem>>, vector<1x8x128xf32>
    %462 = vector.shape_cast %461 : vector<1x8x128xf32> to vector<8x128xf32>
    %463 = vector.shape_cast %460 : vector<8x128xf32> to vector<1x8x128xf32>
    tpu.vector_store %arg6[%c1_228, %c0_229, %c0_230], %463 {strides = array<i32>} : memref<6x8x128xf32, #tpu.memory_space<vmem>>, vector<1x8x128xf32>,
    %c0_231 = arith.constant 0 : index
    %c2_232 = arith.constant 2 : index
    %464 = memref.load %arg3[%c0_231, %c2_232] : memref<12x6xf32, #tpu.memory_space<smem>>
    %465 = vector.broadcast %464 : f32 to vector<8x128xf32>
    %466 = arith.mulf %39, %465 : vector<8x128xf32>
    %c1_233 = arith.constant 1 : index
    %c2_234 = arith.constant 2 : index
    %467 = memref.load %arg3[%c1_233, %c2_234] : memref<12x6xf32, #tpu.memory_space<smem>>
    %468 = vector.broadcast %467 : f32 to vector<8x128xf32>
    %469 = arith.mulf %67, %468 : vector<8x128xf32>
    %470 = arith.addf %466, %469 : vector<8x128xf32>
    %c2_235 = arith.constant 2 : index
    %c2_236 = arith.constant 2 : index
    %471 = memref.load %arg3[%c2_235, %c2_236] : memref<12x6xf32, #tpu.memory_space<smem>>
    %472 = vector.broadcast %471 : f32 to vector<8x128xf32>
    %473 = arith.mulf %95, %472 : vector<8x128xf32>
    %474 = arith.addf %470, %473 : vector<8x128xf32>
    %c3_237 = arith.constant 3 : index
    %c2_238 = arith.constant 2 : index
    %475 = memref.load %arg3[%c3_237, %c2_238] : memref<12x6xf32, #tpu.memory_space<smem>>
    %476 = vector.broadcast %475 : f32 to vector<8x128xf32>
    %477 = arith.mulf %123, %476 : vector<8x128xf32>
    %478 = arith.addf %474, %477 : vector<8x128xf32>
    %c4_239 = arith.constant 4 : index
    %c2_240 = arith.constant 2 : index
    %479 = memref.load %arg3[%c4_239, %c2_240] : memref<12x6xf32, #tpu.memory_space<smem>>
    %480 = vector.broadcast %479 : f32 to vector<8x128xf32>
    %481 = arith.mulf %151, %480 : vector<8x128xf32>
    %482 = arith.addf %478, %481 : vector<8x128xf32>
    %c5_241 = arith.constant 5 : index
    %c2_242 = arith.constant 2 : index
    %483 = memref.load %arg3[%c5_241, %c2_242] : memref<12x6xf32, #tpu.memory_space<smem>>
    %484 = vector.broadcast %483 : f32 to vector<8x128xf32>
    %485 = arith.mulf %179, %484 : vector<8x128xf32>
    %486 = arith.addf %482, %485 : vector<8x128xf32>
    %c6_243 = arith.constant 6 : index
    %c2_244 = arith.constant 2 : index
    %487 = memref.load %arg3[%c6_243, %c2_244] : memref<12x6xf32, #tpu.memory_space<smem>>
    %488 = vector.broadcast %487 : f32 to vector<8x128xf32>
    %489 = arith.mulf %207, %488 : vector<8x128xf32>
    %490 = arith.addf %486, %489 : vector<8x128xf32>
    %c7_245 = arith.constant 7 : index
    %c2_246 = arith.constant 2 : index
    %491 = memref.load %arg3[%c7_245, %c2_246] : memref<12x6xf32, #tpu.memory_space<smem>>
    %492 = vector.broadcast %491 : f32 to vector<8x128xf32>
    %493 = arith.mulf %235, %492 : vector<8x128xf32>
    %494 = arith.addf %490, %493 : vector<8x128xf32>
    %c8_247 = arith.constant 8 : index
    %c2_248 = arith.constant 2 : index
    %495 = memref.load %arg3[%c8_247, %c2_248] : memref<12x6xf32, #tpu.memory_space<smem>>
    %496 = vector.broadcast %495 : f32 to vector<8x128xf32>
    %497 = arith.mulf %263, %496 : vector<8x128xf32>
    %498 = arith.addf %494, %497 : vector<8x128xf32>
    %c9_249 = arith.constant 9 : index
    %c2_250 = arith.constant 2 : index
    %499 = memref.load %arg3[%c9_249, %c2_250] : memref<12x6xf32, #tpu.memory_space<smem>>
    %500 = vector.broadcast %499 : f32 to vector<8x128xf32>
    %501 = arith.mulf %291, %500 : vector<8x128xf32>
    %502 = arith.addf %498, %501 : vector<8x128xf32>
    %c10_251 = arith.constant 10 : index
    %c2_252 = arith.constant 2 : index
    %503 = memref.load %arg3[%c10_251, %c2_252] : memref<12x6xf32, #tpu.memory_space<smem>>
    %504 = vector.broadcast %503 : f32 to vector<8x128xf32>
    %505 = arith.mulf %319, %504 : vector<8x128xf32>
    %506 = arith.addf %502, %505 : vector<8x128xf32>
    %c11_253 = arith.constant 11 : index
    %c2_254 = arith.constant 2 : index
    %507 = memref.load %arg3[%c11_253, %c2_254] : memref<12x6xf32, #tpu.memory_space<smem>>
    %508 = vector.broadcast %507 : f32 to vector<8x128xf32>
    %509 = arith.mulf %347, %508 : vector<8x128xf32>
    %510 = arith.addf %506, %509 : vector<8x128xf32>
    %c2_255 = arith.constant 2 : index
    %511 = memref.load %arg4[%c2_255] : memref<6xf32, #tpu.memory_space<smem>>
    %512 = vector.broadcast %511 : f32 to vector<8x128xf32>
    %513 = arith.addf %510, %512 : vector<8x128xf32>
    %514 = arith.negf %513 : vector<8x128xf32>
    %515 = math.exp %514 : vector<8x128xf32>
    %cst_256 = arith.constant 1.000000e+00 : f32
    %516 = vector.broadcast %cst_256 : f32 to vector<8x128xf32>
    %517 = arith.addf %516, %515 : vector<8x128xf32>
    %518 = arith.divf %516, %517 : vector<8x128xf32>
    %c2_257 = arith.constant 2 : index
    %c0_258 = arith.constant 0 : index
    %c0_259 = arith.constant 0 : index
    %519 = vector.load %arg6[%c2_257, %c0_258, %c0_259] : memref<6x8x128xf32, #tpu.memory_space<vmem>>, vector<1x8x128xf32>
    %520 = vector.shape_cast %519 : vector<1x8x128xf32> to vector<8x128xf32>
    %521 = vector.shape_cast %518 : vector<8x128xf32> to vector<1x8x128xf32>
    tpu.vector_store %arg6[%c2_257, %c0_258, %c0_259], %521 {strides = array<i32>} : memref<6x8x128xf32, #tpu.memory_space<vmem>>, vector<1x8x128xf32>,
    %c0_260 = arith.constant 0 : index
    %c3_261 = arith.constant 3 : index
    %522 = memref.load %arg3[%c0_260, %c3_261] : memref<12x6xf32, #tpu.memory_space<smem>>
    %523 = vector.broadcast %522 : f32 to vector<8x128xf32>
    %524 = arith.mulf %39, %523 : vector<8x128xf32>
    %c1_262 = arith.constant 1 : index
    %c3_263 = arith.constant 3 : index
    %525 = memref.load %arg3[%c1_262, %c3_263] : memref<12x6xf32, #tpu.memory_space<smem>>
    %526 = vector.broadcast %525 : f32 to vector<8x128xf32>
    %527 = arith.mulf %67, %526 : vector<8x128xf32>
    %528 = arith.addf %524, %527 : vector<8x128xf32>
    %c2_264 = arith.constant 2 : index
    %c3_265 = arith.constant 3 : index
    %529 = memref.load %arg3[%c2_264, %c3_265] : memref<12x6xf32, #tpu.memory_space<smem>>
    %530 = vector.broadcast %529 : f32 to vector<8x128xf32>
    %531 = arith.mulf %95, %530 : vector<8x128xf32>
    %532 = arith.addf %528, %531 : vector<8x128xf32>
    %c3_266 = arith.constant 3 : index
    %c3_267 = arith.constant 3 : index
    %533 = memref.load %arg3[%c3_266, %c3_267] : memref<12x6xf32, #tpu.memory_space<smem>>
    %534 = vector.broadcast %533 : f32 to vector<8x128xf32>
    %535 = arith.mulf %123, %534 : vector<8x128xf32>
    %536 = arith.addf %532, %535 : vector<8x128xf32>
    %c4_268 = arith.constant 4 : index
    %c3_269 = arith.constant 3 : index
    %537 = memref.load %arg3[%c4_268, %c3_269] : memref<12x6xf32, #tpu.memory_space<smem>>
    %538 = vector.broadcast %537 : f32 to vector<8x128xf32>
    %539 = arith.mulf %151, %538 : vector<8x128xf32>
    %540 = arith.addf %536, %539 : vector<8x128xf32>
    %c5_270 = arith.constant 5 : index
    %c3_271 = arith.constant 3 : index
    %541 = memref.load %arg3[%c5_270, %c3_271] : memref<12x6xf32, #tpu.memory_space<smem>>
    %542 = vector.broadcast %541 : f32 to vector<8x128xf32>
    %543 = arith.mulf %179, %542 : vector<8x128xf32>
    %544 = arith.addf %540, %543 : vector<8x128xf32>
    %c6_272 = arith.constant 6 : index
    %c3_273 = arith.constant 3 : index
    %545 = memref.load %arg3[%c6_272, %c3_273] : memref<12x6xf32, #tpu.memory_space<smem>>
    %546 = vector.broadcast %545 : f32 to vector<8x128xf32>
    %547 = arith.mulf %207, %546 : vector<8x128xf32>
    %548 = arith.addf %544, %547 : vector<8x128xf32>
    %c7_274 = arith.constant 7 : index
    %c3_275 = arith.constant 3 : index
    %549 = memref.load %arg3[%c7_274, %c3_275] : memref<12x6xf32, #tpu.memory_space<smem>>
    %550 = vector.broadcast %549 : f32 to vector<8x128xf32>
    %551 = arith.mulf %235, %550 : vector<8x128xf32>
    %552 = arith.addf %548, %551 : vector<8x128xf32>
    %c8_276 = arith.constant 8 : index
    %c3_277 = arith.constant 3 : index
    %553 = memref.load %arg3[%c8_276, %c3_277] : memref<12x6xf32, #tpu.memory_space<smem>>
    %554 = vector.broadcast %553 : f32 to vector<8x128xf32>
    %555 = arith.mulf %263, %554 : vector<8x128xf32>
    %556 = arith.addf %552, %555 : vector<8x128xf32>
    %c9_278 = arith.constant 9 : index
    %c3_279 = arith.constant 3 : index
    %557 = memref.load %arg3[%c9_278, %c3_279] : memref<12x6xf32, #tpu.memory_space<smem>>
    %558 = vector.broadcast %557 : f32 to vector<8x128xf32>
    %559 = arith.mulf %291, %558 : vector<8x128xf32>
    %560 = arith.addf %556, %559 : vector<8x128xf32>
    %c10_280 = arith.constant 10 : index
    %c3_281 = arith.constant 3 : index
    %561 = memref.load %arg3[%c10_280, %c3_281] : memref<12x6xf32, #tpu.memory_space<smem>>
    %562 = vector.broadcast %561 : f32 to vector<8x128xf32>
    %563 = arith.mulf %319, %562 : vector<8x128xf32>
    %564 = arith.addf %560, %563 : vector<8x128xf32>
    %c11_282 = arith.constant 11 : index
    %c3_283 = arith.constant 3 : index
    %565 = memref.load %arg3[%c11_282, %c3_283] : memref<12x6xf32, #tpu.memory_space<smem>>
    %566 = vector.broadcast %565 : f32 to vector<8x128xf32>
    %567 = arith.mulf %347, %566 : vector<8x128xf32>
    %568 = arith.addf %564, %567 : vector<8x128xf32>
    %c3_284 = arith.constant 3 : index
    %569 = memref.load %arg4[%c3_284] : memref<6xf32, #tpu.memory_space<smem>>
    %570 = vector.broadcast %569 : f32 to vector<8x128xf32>
    %571 = arith.addf %568, %570 : vector<8x128xf32>
    %572 = arith.negf %571 : vector<8x128xf32>
    %573 = math.exp %572 : vector<8x128xf32>
    %cst_285 = arith.constant 1.000000e+00 : f32
    %574 = vector.broadcast %cst_285 : f32 to vector<8x128xf32>
    %575 = arith.addf %574, %573 : vector<8x128xf32>
    %576 = arith.divf %574, %575 : vector<8x128xf32>
    %c3_286 = arith.constant 3 : index
    %c0_287 = arith.constant 0 : index
    %c0_288 = arith.constant 0 : index
    %577 = vector.load %arg6[%c3_286, %c0_287, %c0_288] : memref<6x8x128xf32, #tpu.memory_space<vmem>>, vector<1x8x128xf32>
    %578 = vector.shape_cast %577 : vector<1x8x128xf32> to vector<8x128xf32>
    %579 = vector.shape_cast %576 : vector<8x128xf32> to vector<1x8x128xf32>
    tpu.vector_store %arg6[%c3_286, %c0_287, %c0_288], %579 {strides = array<i32>} : memref<6x8x128xf32, #tpu.memory_space<vmem>>, vector<1x8x128xf32>,
    %c0_289 = arith.constant 0 : index
    %c4_290 = arith.constant 4 : index
    %580 = memref.load %arg3[%c0_289, %c4_290] : memref<12x6xf32, #tpu.memory_space<smem>>
    %581 = vector.broadcast %580 : f32 to vector<8x128xf32>
    %582 = arith.mulf %39, %581 : vector<8x128xf32>
    %c1_291 = arith.constant 1 : index
    %c4_292 = arith.constant 4 : index
    %583 = memref.load %arg3[%c1_291, %c4_292] : memref<12x6xf32, #tpu.memory_space<smem>>
    %584 = vector.broadcast %583 : f32 to vector<8x128xf32>
    %585 = arith.mulf %67, %584 : vector<8x128xf32>
    %586 = arith.addf %582, %585 : vector<8x128xf32>
    %c2_293 = arith.constant 2 : index
    %c4_294 = arith.constant 4 : index
    %587 = memref.load %arg3[%c2_293, %c4_294] : memref<12x6xf32, #tpu.memory_space<smem>>
    %588 = vector.broadcast %587 : f32 to vector<8x128xf32>
    %589 = arith.mulf %95, %588 : vector<8x128xf32>
    %590 = arith.addf %586, %589 : vector<8x128xf32>
    %c3_295 = arith.constant 3 : index
    %c4_296 = arith.constant 4 : index
    %591 = memref.load %arg3[%c3_295, %c4_296] : memref<12x6xf32, #tpu.memory_space<smem>>
    %592 = vector.broadcast %591 : f32 to vector<8x128xf32>
    %593 = arith.mulf %123, %592 : vector<8x128xf32>
    %594 = arith.addf %590, %593 : vector<8x128xf32>
    %c4_297 = arith.constant 4 : index
    %c4_298 = arith.constant 4 : index
    %595 = memref.load %arg3[%c4_297, %c4_298] : memref<12x6xf32, #tpu.memory_space<smem>>
    %596 = vector.broadcast %595 : f32 to vector<8x128xf32>
    %597 = arith.mulf %151, %596 : vector<8x128xf32>
    %598 = arith.addf %594, %597 : vector<8x128xf32>
    %c5_299 = arith.constant 5 : index
    %c4_300 = arith.constant 4 : index
    %599 = memref.load %arg3[%c5_299, %c4_300] : memref<12x6xf32, #tpu.memory_space<smem>>
    %600 = vector.broadcast %599 : f32 to vector<8x128xf32>
    %601 = arith.mulf %179, %600 : vector<8x128xf32>
    %602 = arith.addf %598, %601 : vector<8x128xf32>
    %c6_301 = arith.constant 6 : index
    %c4_302 = arith.constant 4 : index
    %603 = memref.load %arg3[%c6_301, %c4_302] : memref<12x6xf32, #tpu.memory_space<smem>>
    %604 = vector.broadcast %603 : f32 to vector<8x128xf32>
    %605 = arith.mulf %207, %604 : vector<8x128xf32>
    %606 = arith.addf %602, %605 : vector<8x128xf32>
    %c7_303 = arith.constant 7 : index
    %c4_304 = arith.constant 4 : index
    %607 = memref.load %arg3[%c7_303, %c4_304] : memref<12x6xf32, #tpu.memory_space<smem>>
    %608 = vector.broadcast %607 : f32 to vector<8x128xf32>
    %609 = arith.mulf %235, %608 : vector<8x128xf32>
    %610 = arith.addf %606, %609 : vector<8x128xf32>
    %c8_305 = arith.constant 8 : index
    %c4_306 = arith.constant 4 : index
    %611 = memref.load %arg3[%c8_305, %c4_306] : memref<12x6xf32, #tpu.memory_space<smem>>
    %612 = vector.broadcast %611 : f32 to vector<8x128xf32>
    %613 = arith.mulf %263, %612 : vector<8x128xf32>
    %614 = arith.addf %610, %613 : vector<8x128xf32>
    %c9_307 = arith.constant 9 : index
    %c4_308 = arith.constant 4 : index
    %615 = memref.load %arg3[%c9_307, %c4_308] : memref<12x6xf32, #tpu.memory_space<smem>>
    %616 = vector.broadcast %615 : f32 to vector<8x128xf32>
    %617 = arith.mulf %291, %616 : vector<8x128xf32>
    %618 = arith.addf %614, %617 : vector<8x128xf32>
    %c10_309 = arith.constant 10 : index
    %c4_310 = arith.constant 4 : index
    %619 = memref.load %arg3[%c10_309, %c4_310] : memref<12x6xf32, #tpu.memory_space<smem>>
    %620 = vector.broadcast %619 : f32 to vector<8x128xf32>
    %621 = arith.mulf %319, %620 : vector<8x128xf32>
    %622 = arith.addf %618, %621 : vector<8x128xf32>
    %c11_311 = arith.constant 11 : index
    %c4_312 = arith.constant 4 : index
    %623 = memref.load %arg3[%c11_311, %c4_312] : memref<12x6xf32, #tpu.memory_space<smem>>
    %624 = vector.broadcast %623 : f32 to vector<8x128xf32>
    %625 = arith.mulf %347, %624 : vector<8x128xf32>
    %626 = arith.addf %622, %625 : vector<8x128xf32>
    %c4_313 = arith.constant 4 : index
    %627 = memref.load %arg4[%c4_313] : memref<6xf32, #tpu.memory_space<smem>>
    %628 = vector.broadcast %627 : f32 to vector<8x128xf32>
    %629 = arith.addf %626, %628 : vector<8x128xf32>
    %630 = arith.negf %629 : vector<8x128xf32>
    %631 = math.exp %630 : vector<8x128xf32>
    %cst_314 = arith.constant 1.000000e+00 : f32
    %632 = vector.broadcast %cst_314 : f32 to vector<8x128xf32>
    %633 = arith.addf %632, %631 : vector<8x128xf32>
    %634 = arith.divf %632, %633 : vector<8x128xf32>
    %c4_315 = arith.constant 4 : index
    %c0_316 = arith.constant 0 : index
    %c0_317 = arith.constant 0 : index
    %635 = vector.load %arg6[%c4_315, %c0_316, %c0_317] : memref<6x8x128xf32, #tpu.memory_space<vmem>>, vector<1x8x128xf32>
    %636 = vector.shape_cast %635 : vector<1x8x128xf32> to vector<8x128xf32>
    %637 = vector.shape_cast %634 : vector<8x128xf32> to vector<1x8x128xf32>
    tpu.vector_store %arg6[%c4_315, %c0_316, %c0_317], %637 {strides = array<i32>} : memref<6x8x128xf32, #tpu.memory_space<vmem>>, vector<1x8x128xf32>,
    %c0_318 = arith.constant 0 : index
    %c5_319 = arith.constant 5 : index
    %638 = memref.load %arg3[%c0_318, %c5_319] : memref<12x6xf32, #tpu.memory_space<smem>>
    %639 = vector.broadcast %638 : f32 to vector<8x128xf32>
    %640 = arith.mulf %39, %639 : vector<8x128xf32>
    %c1_320 = arith.constant 1 : index
    %c5_321 = arith.constant 5 : index
    %641 = memref.load %arg3[%c1_320, %c5_321] : memref<12x6xf32, #tpu.memory_space<smem>>
    %642 = vector.broadcast %641 : f32 to vector<8x128xf32>
    %643 = arith.mulf %67, %642 : vector<8x128xf32>
    %644 = arith.addf %640, %643 : vector<8x128xf32>
    %c2_322 = arith.constant 2 : index
    %c5_323 = arith.constant 5 : index
    %645 = memref.load %arg3[%c2_322, %c5_323] : memref<12x6xf32, #tpu.memory_space<smem>>
    %646 = vector.broadcast %645 : f32 to vector<8x128xf32>
    %647 = arith.mulf %95, %646 : vector<8x128xf32>
    %648 = arith.addf %644, %647 : vector<8x128xf32>
    %c3_324 = arith.constant 3 : index
    %c5_325 = arith.constant 5 : index
    %649 = memref.load %arg3[%c3_324, %c5_325] : memref<12x6xf32, #tpu.memory_space<smem>>
    %650 = vector.broadcast %649 : f32 to vector<8x128xf32>
    %651 = arith.mulf %123, %650 : vector<8x128xf32>
    %652 = arith.addf %648, %651 : vector<8x128xf32>
    %c4_326 = arith.constant 4 : index
    %c5_327 = arith.constant 5 : index
    %653 = memref.load %arg3[%c4_326, %c5_327] : memref<12x6xf32, #tpu.memory_space<smem>>
    %654 = vector.broadcast %653 : f32 to vector<8x128xf32>
    %655 = arith.mulf %151, %654 : vector<8x128xf32>
    %656 = arith.addf %652, %655 : vector<8x128xf32>
    %c5_328 = arith.constant 5 : index
    %c5_329 = arith.constant 5 : index
    %657 = memref.load %arg3[%c5_328, %c5_329] : memref<12x6xf32, #tpu.memory_space<smem>>
    %658 = vector.broadcast %657 : f32 to vector<8x128xf32>
    %659 = arith.mulf %179, %658 : vector<8x128xf32>
    %660 = arith.addf %656, %659 : vector<8x128xf32>
    %c6_330 = arith.constant 6 : index
    %c5_331 = arith.constant 5 : index
    %661 = memref.load %arg3[%c6_330, %c5_331] : memref<12x6xf32, #tpu.memory_space<smem>>
    %662 = vector.broadcast %661 : f32 to vector<8x128xf32>
    %663 = arith.mulf %207, %662 : vector<8x128xf32>
    %664 = arith.addf %660, %663 : vector<8x128xf32>
    %c7_332 = arith.constant 7 : index
    %c5_333 = arith.constant 5 : index
    %665 = memref.load %arg3[%c7_332, %c5_333] : memref<12x6xf32, #tpu.memory_space<smem>>
    %666 = vector.broadcast %665 : f32 to vector<8x128xf32>
    %667 = arith.mulf %235, %666 : vector<8x128xf32>
    %668 = arith.addf %664, %667 : vector<8x128xf32>
    %c8_334 = arith.constant 8 : index
    %c5_335 = arith.constant 5 : index
    %669 = memref.load %arg3[%c8_334, %c5_335] : memref<12x6xf32, #tpu.memory_space<smem>>
    %670 = vector.broadcast %669 : f32 to vector<8x128xf32>
    %671 = arith.mulf %263, %670 : vector<8x128xf32>
    %672 = arith.addf %668, %671 : vector<8x128xf32>
    %c9_336 = arith.constant 9 : index
    %c5_337 = arith.constant 5 : index
    %673 = memref.load %arg3[%c9_336, %c5_337] : memref<12x6xf32, #tpu.memory_space<smem>>
    %674 = vector.broadcast %673 : f32 to vector<8x128xf32>
    %675 = arith.mulf %291, %674 : vector<8x128xf32>
    %676 = arith.addf %672, %675 : vector<8x128xf32>
    %c10_338 = arith.constant 10 : index
    %c5_339 = arith.constant 5 : index
    %677 = memref.load %arg3[%c10_338, %c5_339] : memref<12x6xf32, #tpu.memory_space<smem>>
    %678 = vector.broadcast %677 : f32 to vector<8x128xf32>
    %679 = arith.mulf %319, %678 : vector<8x128xf32>
    %680 = arith.addf %676, %679 : vector<8x128xf32>
    %c11_340 = arith.constant 11 : index
    %c5_341 = arith.constant 5 : index
    %681 = memref.load %arg3[%c11_340, %c5_341] : memref<12x6xf32, #tpu.memory_space<smem>>
    %682 = vector.broadcast %681 : f32 to vector<8x128xf32>
    %683 = arith.mulf %347, %682 : vector<8x128xf32>
    %684 = arith.addf %680, %683 : vector<8x128xf32>
    %c5_342 = arith.constant 5 : index
    %685 = memref.load %arg4[%c5_342] : memref<6xf32, #tpu.memory_space<smem>>
    %686 = vector.broadcast %685 : f32 to vector<8x128xf32>
    %687 = arith.addf %684, %686 : vector<8x128xf32>
    %688 = arith.negf %687 : vector<8x128xf32>
    %689 = math.exp %688 : vector<8x128xf32>
    %cst_343 = arith.constant 1.000000e+00 : f32
    %690 = vector.broadcast %cst_343 : f32 to vector<8x128xf32>
    %691 = arith.addf %690, %689 : vector<8x128xf32>
    %692 = arith.divf %690, %691 : vector<8x128xf32>
    %c5_344 = arith.constant 5 : index
    %c0_345 = arith.constant 0 : index
    %c0_346 = arith.constant 0 : index
    %693 = vector.load %arg6[%c5_344, %c0_345, %c0_346] : memref<6x8x128xf32, #tpu.memory_space<vmem>>, vector<1x8x128xf32>
    %694 = vector.shape_cast %693 : vector<1x8x128xf32> to vector<8x128xf32>
    %695 = vector.shape_cast %692 : vector<8x128xf32> to vector<1x8x128xf32>
    tpu.vector_store %arg6[%c5_344, %c0_345, %c0_346], %695 {strides = array<i32>} : memref<6x8x128xf32, #tpu.memory_space<vmem>>, vector<1x8x128xf32>,
    return
  }
  func.func @transform_0(%arg0: i32) -> (i32, i32) {
    %c0_i32 = arith.constant 0 : i32
    %c0_i32_0 = arith.constant 0 : i32
    %c0_i32_1 = arith.constant 0 : i32
    return %c0_i32, %c0_i32_0 : i32, i32
  }
  func.func @transform_1(%arg0: i32) -> i32 {
    %c0_i32 = arith.constant 0 : i32
    %c0_i32_0 = arith.constant 0 : i32
    return %c0_i32 : i32
  }
  func.func @transform_2(%arg0: i32) -> (i32, i32) {
    %c0_i32 = arith.constant 0 : i32
    %c0_i32_0 = arith.constant 0 : i32
    %c0_i32_1 = arith.constant 0 : i32
    return %c0_i32, %c0_i32_0 : i32, i32
  }
  func.func @transform_3(%arg0: i32) -> i32 {
    %c0_i32 = arith.constant 0 : i32
    %c0_i32_0 = arith.constant 0 : i32
    return %c0_i32 : i32
  }
  func.func @transform_4(%arg0: i32) -> (i32, i32, i32) {
    %c0_i32 = arith.constant 0 : i32
    %c0_i32_0 = arith.constant 0 : i32
    %c0_i32_1 = arith.constant 0 : i32
    return %c0_i32, %arg0, %c0_i32_0 : i32, i32, i32
  }
  func.func @transform_5(%arg0: i32) -> (i32, i32, i32) {
    %c0_i32 = arith.constant 0 : i32
    %c0_i32_0 = arith.constant 0 : i32
    %c0_i32_1 = arith.constant 0 : i32
    return %c0_i32, %arg0, %c0_i32_0 : i32, i32, i32
  }
}

</mosaic_0001>

<llo_original>
// kernel: tpu_custom_call.1
$region0: #{tpu_custom_call.1}
  #allocation0 [shape = 'u32[]', space=smem, size = 0x4, offset = 0x4, fixed_abs, tag = 'smem constant byte address 0x4 - core index']
  #allocation1 [shape = 'u32[72,128]{1,0:T(1,128)}', space=vmem, size = 0x9000, scoped, tag = 'internal scratch']
  %s0 = inlined_call_operand.vmem [shape: f32[6,12], index: 0, kind: input, shape index: {}]
  %s1 = inlined_call_operand.vmem [shape: f32[12], index: 1, kind: input, shape index: {}]
  %s2 = inlined_call_operand.vmem [shape: f32[12,6], index: 2, kind: input, shape index: {}]
  %s3 = inlined_call_operand.vmem [shape: f32[6], index: 3, kind: input, shape index: {}]
  %s4 = inlined_call_operand.hbm [shape: f32[6,8,128], index: 4, kind: input, shape index: {}]
  %s5 = inlined_call_operand.hbm [shape: f32[6,8,128], index: 5, kind: output, shape index: {}]
  %s6 = sld [smem:[#allocation0]]
  $region50: #{tpu_custom_call.1} parent=0
    _
  %s8 = ssub.s32 1, %s6
  %s9 = scalar_select 0, %s8, %s6
  $region1: #{tpu_custom_call.1} parent=0
    #allocation2 [shape = 'u8[4096]{0}', space=smem, size = 0x1000, scoped, tag = 'input window, operand 0, single buffered']
    #allocation3 [shape = 's32[1]{0}', space=sflag, size = 0x4, scoped, tag = 'scoped memory for tpu_custom_call.1']
    #allocation4 [shape = 's32[1]{0}', space=sflag, size = 0x4, scoped, tag = 'scoped memory for tpu_custom_call.1']
    #allocation5 [shape = 's32[1]{0}', space=sflag, size = 0x4, scoped, tag = 'scoped memory for tpu_custom_call.1']
    #allocation6 [shape = 'u8[512]{0}', space=smem, size = 0x200, scoped, tag = 'input window, operand 1, single buffered']
    #allocation7 [shape = 's32[1]{0}', space=sflag, size = 0x4, scoped, tag = 'scoped memory for tpu_custom_call.1']
    #allocation8 [shape = 'u8[8192]{0}', space=smem, size = 0x2000, scoped, tag = 'input window, operand 2, single buffered']
    #allocation9 [shape = 'u8[512]{0}', space=smem, size = 0x200, scoped, tag = 'input window, operand 3, single buffered']
    #allocation10 [shape = 's32[1]{0}', space=sflag, size = 0x4, scoped, tag = 'scoped memory for tpu_custom_call.1']
    #allocation11 [shape = 'u8[24576]{0}', space=vmem, size = 0x6000, scoped, tag = 'input window, operand 4, single buffered']
    #allocation12 [shape = 'u8[24576]{0}', space=vmem, size = 0x6000, scoped, tag = 'output window, operand 0, single buffered']
    %10 = vsyncpa [#allocation5], 0
    %11 = vsyncpa [#allocation7], 0
    %12 = vsyncpa [#allocation10], 0
    %13 = vsyncpa [#allocation3], 0
    %14 = vsyncpa [#allocation4], 0
    // Predicated region
    $region2: #{tpu_custom_call.1} parent=1 // pred_check
      _
    $region3: #{tpu_custom_call.1} parent=1 // pred_check_branch
      %16 = sbr.rel (0) target = $region5
    $region4: #{tpu_custom_call.1} parent=1 // pred_region
      %18 = vsyncadd [#allocation5], 0
      %s20 = sshll.u32 %s0, 4
      %s21 = int_to_ptr.vmem [resolvable:$true] %s20
      %23 = dma.vmem_to_smem %s21, 128, [#allocation2], [#allocation5]
    $region5: #{tpu_custom_call.1} parent=1 // pred_fallthru
      _
    // Predicated region
    $region6: #{tpu_custom_call.1} parent=1 // pred_check
      _
    $region7: #{tpu_custom_call.1} parent=1 // pred_check_branch
      %25 = sbr.rel (0) target = $region9
    $region8: #{tpu_custom_call.1} parent=1 // pred_region
      %27 = vsyncadd [#allocation7], 0
      %s29 = sshll.u32 %s1, 4
      %s30 = int_to_ptr.vmem [resolvable:$true] %s29
      %32 = dma.vmem_to_smem %s30, 16, [#allocation6], [#allocation7]
    $region9: #{tpu_custom_call.1} parent=1 // pred_fallthru
      _
    // Predicated region
    $region10: #{tpu_custom_call.1} parent=1 // pred_check
      _
    $region11: #{tpu_custom_call.1} parent=1 // pred_check_branch
      %34 = sbr.rel (0) target = $region13
    $region12: #{tpu_custom_call.1} parent=1 // pred_region
      %36 = vsyncadd [#allocation7], 0
      %s37 = sshll.u32 %s2, 4
      %s38 = int_to_ptr.vmem [resolvable:$true] %s37
      %43 = dma.vmem_to_smem %s38, 256, [#allocation8], [#allocation7], 128, 128, 8
    $region13: #{tpu_custom_call.1} parent=1 // pred_fallthru
      _
    // Predicated region
    $region14: #{tpu_custom_call.1} parent=1 // pred_check
      _
    $region15: #{tpu_custom_call.1} parent=1 // pred_check_branch
      %45 = sbr.rel (0) target = $region17
    $region16: #{tpu_custom_call.1} parent=1 // pred_region
      %47 = vsyncadd [#allocation10], 0
      %s49 = sshll.u32 %s3, 4
      %s50 = int_to_ptr.vmem [resolvable:$true] %s49
      %52 = dma.vmem_to_smem %s50, 16, [#allocation9], [#allocation10]
    $region17: #{tpu_custom_call.1} parent=1 // pred_fallthru
      _
    // Predicated region
    $region18: #{tpu_custom_call.1} parent=1 // pred_check
      _
    $region19: #{tpu_custom_call.1} parent=1 // pred_check_branch
      %54 = sbr.rel (0) target = $region21
    $region20: #{tpu_custom_call.1} parent=1 // pred_region
      %56 = vsyncadd [#allocation3], 0
      %s57 = sshll.u32 %s4, 4
      %s58 = int_to_ptr.hbm [resolvable:$true] %s57
      %s59 = sshll.u32 [#allocation11], 4
      %s60 = int_to_ptr.vmem [resolvable:$true] %s59
      %65 = dma.hbm_to_vmem [thread:$0]  %s58, 768, %s60, [#allocation3], 128, 128, 8
    $region21: #{tpu_custom_call.1} parent=1 // pred_fallthru
      _
    // Predicated region
    $region22: #{tpu_custom_call.1} parent=1 // pred_check
      _
    $region23: #{tpu_custom_call.1} parent=1 // pred_check_branch
      %67 = sbr.rel (0) target = $region25
    $region24: #{tpu_custom_call.1} parent=1 // pred_region
      %69 = dma.done [#allocation5], 128
    $region25: #{tpu_custom_call.1} parent=1 // pred_fallthru
      _
    // Predicated region
    $region26: #{tpu_custom_call.1} parent=1 // pred_check
      _
    $region27: #{tpu_custom_call.1} parent=1 // pred_check_branch
      %71 = sbr.rel (0) target = $region29
    $region28: #{tpu_custom_call.1} parent=1 // pred_region
      %73 = dma.done [#allocation7], 16
    $region29: #{tpu_custom_call.1} parent=1 // pred_fallthru
      _
    // Predicated region
    $region30: #{tpu_custom_call.1} parent=1 // pred_check
      _
    $region31: #{tpu_custom_call.1} parent=1 // pred_check_branch
      %75 = sbr.rel (0) target = $region33
    $region32: #{tpu_custom_call.1} parent=1 // pred_region
      %77 = dma.done [#allocation7], 256
    $region33: #{tpu_custom_call.1} parent=1 // pred_fallthru
      _
    // Predicated region
    $region34: #{tpu_custom_call.1} parent=1 // pred_check
      _
    $region35: #{tpu_custom_call.1} parent=1 // pred_check_branch
      %79 = sbr.rel (0) target = $region37
    $region36: #{tpu_custom_call.1} parent=1 // pred_region
      %81 = dma.done [#allocation10], 16
    $region37: #{tpu_custom_call.1} parent=1 // pred_fallthru
      _
    // Predicated region
    $region38: #{tpu_custom_call.1} parent=1 // pred_check
      _
    $region39: #{tpu_custom_call.1} parent=1 // pred_check_branch
      %83 = sbr.rel (0) target = $region41
    $region40: #{tpu_custom_call.1} parent=1 // pred_region
      %85 = dma.done [#allocation3], 768
    $region41: #{tpu_custom_call.1} parent=1 // pred_fallthru
      _
    %86 = sfence
    %v87 = vld [vmem:[#allocation11] sm:$0xff]
    %s88 = scalar_lea.vmem [#allocation11], 8
    %v89 = vld [vmem:[%s88] sm:$0xff]
    %s90 = scalar_lea.vmem [#allocation11], 16
    %v91 = vld [vmem:[%s90] sm:$0xff]
    %s92 = scalar_lea.vmem [#allocation11], 24
    %v93 = vld [vmem:[%s92] sm:$0xff]
    %s94 = scalar_lea.vmem [#allocation11], 32
    %v95 = vld [vmem:[%s94] sm:$0xff]
    %s96 = scalar_lea.vmem [#allocation11], 40
    %v97 = vld [vmem:[%s96] sm:$0xff]
    %s98 = sld [smem:[#allocation2]]
    %v99 = vstv %s98
    %v100 = vmul.f32 %v87, %v99
    %s101 = sld [smem:[#allocation2 + $0x80]]
    %v102 = vstv %s101
    %v103 = vmul.f32 %v89, %v102
    %v104 = vadd.f32 %v100, %v103
    %s105 = sld [smem:[#allocation2 + $0x100]]
    %v106 = vstv %s105
    %v107 = vmul.f32 %v91, %v106
    %v108 = vadd.f32 %v104, %v107
    %s109 = sld [smem:[#allocation2 + $0x180]]
    %v110 = vstv %s109
    %v111 = vmul.f32 %v93, %v110
    %v112 = vadd.f32 %v108, %v111
    %s113 = sld [smem:[#allocation2 + $0x200]]
    %v114 = vstv %s113
    %v115 = vmul.f32 %v95, %v114
    %v116 = vadd.f32 %v112, %v115
    %s117 = sld [smem:[#allocation2 + $0x280]]
    %v118 = vstv %s117
    %v119 = vmul.f32 %v97, %v118
    %v120 = vadd.f32 %v116, %v119
    %s121 = sld [smem:[#allocation6]]
    %v122 = vstv %s121
    %v123 = vadd.f32 %v120, %v122
    %v124 = vmax.f32 %v123, 0.0
    %s125 = sld [smem:[#allocation2 + $0x1]]
    %v126 = vstv %s125
    %v127 = vmul.f32 %v87, %v126
    %s128 = sld [smem:[#allocation2 + $0x81]]
    %v129 = vstv %s128
    %v130 = vmul.f32 %v89, %v129
    %v131 = vadd.f32 %v127, %v130
    %s132 = sld [smem:[#allocation2 + $0x101]]
    %v133 = vstv %s132
    %v134 = vmul.f32 %v91, %v133
    %v135 = vadd.f32 %v131, %v134
    %s136 = sld [smem:[#allocation2 + $0x181]]
    %v137 = vstv %s136
    %v138 = vmul.f32 %v93, %v137
    %v139 = vadd.f32 %v135, %v138
    %s140 = sld [smem:[#allocation2 + $0x201]]
    %v141 = vstv %s140
    %v142 = vmul.f32 %v95, %v141
    %v143 = vadd.f32 %v139, %v142
    %s144 = sld [smem:[#allocation2 + $0x281]]
    %v145 = vstv %s144
    %v146 = vmul.f32 %v97, %v145
    %v147 = vadd.f32 %v143, %v146
    %s148 = sld [smem:[#allocation6 + $0x1]]
    %v149 = vstv %s148
    %v150 = vadd.f32 %v147, %v149
    %v151 = vmax.f32 %v150, 0.0
    %s152 = sld [smem:[#allocation2 + $0x2]]
    %v153 = vstv %s152
    %v154 = vmul.f32 %v87, %v153
    %s155 = sld [smem:[#allocation2 + $0x82]]
    %v156 = vstv %s155
    %v157 = vmul.f32 %v89, %v156
    %v158 = vadd.f32 %v154, %v157
    %s159 = sld [smem:[#allocation2 + $0x102]]
    %v160 = vstv %s159
    %v161 = vmul.f32 %v91, %v160
    %v162 = vadd.f32 %v158, %v161
    %s163 = sld [smem:[#allocation2 + $0x182]]
    %v164 = vstv %s163
    %v165 = vmul.f32 %v93, %v164
    %v166 = vadd.f32 %v162, %v165
    %s167 = sld [smem:[#allocation2 + $0x202]]
    %v168 = vstv %s167
    %v169 = vmul.f32 %v95, %v168
    %v170 = vadd.f32 %v166, %v169
    %s171 = sld [smem:[#allocation2 + $0x282]]
    %v172 = vstv %s171
    %v173 = vmul.f32 %v97, %v172
    %v174 = vadd.f32 %v170, %v173
    %s175 = sld [smem:[#allocation6 + $0x2]]
    %v176 = vstv %s175
    %v177 = vadd.f32 %v174, %v176
    %v178 = vmax.f32 %v177, 0.0
    %s179 = sld [smem:[#allocation2 + $0x3]]
    %v180 = vstv %s179
    %v181 = vmul.f32 %v87, %v180
    %s182 = sld [smem:[#allocation2 + $0x83]]
    %v183 = vstv %s182
    %v184 = vmul.f32 %v89, %v183
    %v185 = vadd.f32 %v181, %v184
    %s186 = sld [smem:[#allocation2 + $0x103]]
    %v187 = vstv %s186
    %v188 = vmul.f32 %v91, %v187
    %v189 = vadd.f32 %v185, %v188
    %s190 = sld [smem:[#allocation2 + $0x183]]
    %v191 = vstv %s190
    %v192 = vmul.f32 %v93, %v191
    %v193 = vadd.f32 %v189, %v192
    %s194 = sld [smem:[#allocation2 + $0x203]]
    %v195 = vstv %s194
    %v196 = vmul.f32 %v95, %v195
    %v197 = vadd.f32 %v193, %v196
    %s198 = sld [smem:[#allocation2 + $0x283]]
    %v199 = vstv %s198
    %v200 = vmul.f32 %v97, %v199
    %v201 = vadd.f32 %v197, %v200
    %s202 = sld [smem:[#allocation6 + $0x3]]
    %v203 = vstv %s202
    %v204 = vadd.f32 %v201, %v203
    %v205 = vmax.f32 %v204, 0.0
    %s206 = sld [smem:[#allocation2 + $0x4]]
    %v207 = vstv %s206
    %v208 = vmul.f32 %v87, %v207
    %s209 = sld [smem:[#allocation2 + $0x84]]
    %v210 = vstv %s209
    %v211 = vmul.f32 %v89, %v210
    %v212 = vadd.f32 %v208, %v211
    %s213 = sld [smem:[#allocation2 + $0x104]]
    %v214 = vstv %s213
    %v215 = vmul.f32 %v91, %v214
    %v216 = vadd.f32 %v212, %v215
    %s217 = sld [smem:[#allocation2 + $0x184]]
    %v218 = vstv %s217
    %v219 = vmul.f32 %v93, %v218
    %v220 = vadd.f32 %v216, %v219
    %s221 = sld [smem:[#allocation2 + $0x204]]
    %v222 = vstv %s221
    %v223 = vmul.f32 %v95, %v222
    %v224 = vadd.f32 %v220, %v223
    %s225 = sld [smem:[#allocation2 + $0x284]]
    %v226 = vstv %s225
    %v227 = vmul.f32 %v97, %v226
    %v228 = vadd.f32 %v224, %v227
    %s229 = sld [smem:[#allocation6 + $0x4]]
    %v230 = vstv %s229
    %v231 = vadd.f32 %v228, %v230
    %v232 = vmax.f32 %v231, 0.0
    %s233 = sld [smem:[#allocation2 + $0x5]]
    %v234 = vstv %s233
    %v235 = vmul.f32 %v87, %v234
    %s236 = sld [smem:[#allocation2 + $0x85]]
    %v237 = vstv %s236
    %v238 = vmul.f32 %v89, %v237
    %v239 = vadd.f32 %v235, %v238
    %s240 = sld [smem:[#allocation2 + $0x105]]
    %v241 = vstv %s240
    %v242 = vmul.f32 %v91, %v241
    %v243 = vadd.f32 %v239, %v242
    %s244 = sld [smem:[#allocation2 + $0x185]]
    %v245 = vstv %s244
    %v246 = vmul.f32 %v93, %v245
    %v247 = vadd.f32 %v243, %v246
    %s248 = sld [smem:[#allocation2 + $0x205]]
    %v249 = vstv %s248
    %v250 = vmul.f32 %v95, %v249
    %v251 = vadd.f32 %v247, %v250
    %s252 = sld [smem:[#allocation2 + $0x285]]
    %v253 = vstv %s252
    %v254 = vmul.f32 %v97, %v253
    %v255 = vadd.f32 %v251, %v254
    %s256 = sld [smem:[#allocation6 + $0x5]]
    %v257 = vstv %s256
    %v258 = vadd.f32 %v255, %v257
    %v259 = vmax.f32 %v258, 0.0
    %s260 = sld [smem:[#allocation2 + $0x6]]
    %v261 = vstv %s260
    %v262 = vmul.f32 %v87, %v261
    %s263 = sld [smem:[#allocation2 + $0x86]]
    %v264 = vstv %s263
    %v265 = vmul.f32 %v89, %v264
    %v266 = vadd.f32 %v262, %v265
    %s267 = sld [smem:[#allocation2 + $0x106]]
    %v268 = vstv %s267
    %v269 = vmul.f32 %v91, %v268
    %v270 = vadd.f32 %v266, %v269
    %s271 = sld [smem:[#allocation2 + $0x186]]
    %v272 = vstv %s271
    %v273 = vmul.f32 %v93, %v272
    %v274 = vadd.f32 %v270, %v273
    %s275 = sld [smem:[#allocation2 + $0x206]]
    %v276 = vstv %s275
    %v277 = vmul.f32 %v95, %v276
    %v278 = vadd.f32 %v274, %v277
    %s279 = sld [smem:[#allocation2 + $0x286]]
    %v280 = vstv %s279
    %v281 = vmul.f32 %v97, %v280
    %v282 = vadd.f32 %v278, %v281
    %s283 = sld [smem:[#allocation6 + $0x6]]
    %v284 = vstv %s283
    %v285 = vadd.f32 %v282, %v284
    %v286 = vmax.f32 %v285, 0.0
    %s287 = sld [smem:[#allocation2 + $0x7]]
    %v288 = vstv %s287
    %v289 = vmul.f32 %v87, %v288
    %s290 = sld [smem:[#allocation2 + $0x87]]
    %v291 = vstv %s290
    %v292 = vmul.f32 %v89, %v291
    %v293 = vadd.f32 %v289, %v292
    %s294 = sld [smem:[#allocation2 + $0x107]]
    %v295 = vstv %s294
    %v296 = vmul.f32 %v91, %v295
    %v297 = vadd.f32 %v293, %v296
    %s298 = sld [smem:[#allocation2 + $0x187]]
    %v299 = vstv %s298
    %v300 = vmul.f32 %v93, %v299
    %v301 = vadd.f32 %v297, %v300
    %s302 = sld [smem:[#allocation2 + $0x207]]
    %v303 = vstv %s302
    %v304 = vmul.f32 %v95, %v303
    %v305 = vadd.f32 %v301, %v304
    %s306 = sld [smem:[#allocation2 + $0x287]]
    %v307 = vstv %s306
    %v308 = vmul.f32 %v97, %v307
    %v309 = vadd.f32 %v305, %v308
    %s310 = sld [smem:[#allocation6 + $0x7]]
    %v311 = vstv %s310
    %v312 = vadd.f32 %v309, %v311
    %v313 = vmax.f32 %v312, 0.0
    %s314 = sld [smem:[#allocation2 + $0x8]]
    %v315 = vstv %s314
    %v316 = vmul.f32 %v87, %v315
    %s317 = sld [smem:[#allocation2 + $0x88]]
    %v318 = vstv %s317
    %v319 = vmul.f32 %v89, %v318
    %v320 = vadd.f32 %v316, %v319
    %s321 = sld [smem:[#allocation2 + $0x108]]
    %v322 = vstv %s321
    %v323 = vmul.f32 %v91, %v322
    %v324 = vadd.f32 %v320, %v323
    %s325 = sld [smem:[#allocation2 + $0x188]]
    %v326 = vstv %s325
    %v327 = vmul.f32 %v93, %v326
    %v328 = vadd.f32 %v324, %v327
    %s329 = sld [smem:[#allocation2 + $0x208]]
    %v330 = vstv %s329
    %v331 = vmul.f32 %v95, %v330
    %v332 = vadd.f32 %v328, %v331
    %s333 = sld [smem:[#allocation2 + $0x288]]
    %v334 = vstv %s333
    %v335 = vmul.f32 %v97, %v334
    %v336 = vadd.f32 %v332, %v335
    %s337 = sld [smem:[#allocation6 + $0x8]]
    %v338 = vstv %s337
    %v339 = vadd.f32 %v336, %v338
    %v340 = vmax.f32 %v339, 0.0
    %s341 = sld [smem:[#allocation2 + $0x9]]
    %v342 = vstv %s341
    %v343 = vmul.f32 %v87, %v342
    %s344 = sld [smem:[#allocation2 + $0x89]]
    %v345 = vstv %s344
    %v346 = vmul.f32 %v89, %v345
    %v347 = vadd.f32 %v343, %v346
    %s348 = sld [smem:[#allocation2 + $0x109]]
    %v349 = vstv %s348
    %v350 = vmul.f32 %v91, %v349
    %v351 = vadd.f32 %v347, %v350
    %s352 = sld [smem:[#allocation2 + $0x189]]
    %v353 = vstv %s352
    %v354 = vmul.f32 %v93, %v353
    %v355 = vadd.f32 %v351, %v354
    %s356 = sld [smem:[#allocation2 + $0x209]]
    %v357 = vstv %s356
    %v358 = vmul.f32 %v95, %v357
    %v359 = vadd.f32 %v355, %v358
    %s360 = sld [smem:[#allocation2 + $0x289]]
    %v361 = vstv %s360
    %v362 = vmul.f32 %v97, %v361
    %v363 = vadd.f32 %v359, %v362
    %s364 = sld [smem:[#allocation6 + $0x9]]
    %v365 = vstv %s364
    %v366 = vadd.f32 %v363, %v365
    %v367 = vmax.f32 %v366, 0.0
    %s368 = sld [smem:[#allocation2 + $0xa]]
    %v369 = vstv %s368
    %v370 = vmul.f32 %v87, %v369
    %s371 = sld [smem:[#allocation2 + $0x8a]]
    %v372 = vstv %s371
    %v373 = vmul.f32 %v89, %v372
    %v374 = vadd.f32 %v370, %v373
    %s375 = sld [smem:[#allocation2 + $0x10a]]
    %v376 = vstv %s375
    %v377 = vmul.f32 %v91, %v376
    %v378 = vadd.f32 %v374, %v377
    %s379 = sld [smem:[#allocation2 + $0x18a]]
    %v380 = vstv %s379
    %v381 = vmul.f32 %v93, %v380
    %v382 = vadd.f32 %v378, %v381
    %s383 = sld [smem:[#allocation2 + $0x20a]]
    %v384 = vstv %s383
    %v385 = vmul.f32 %v95, %v384
    %v386 = vadd.f32 %v382, %v385
    %s387 = sld [smem:[#allocation2 + $0x28a]]
    %v388 = vstv %s387
    %v389 = vmul.f32 %v97, %v388
    %v390 = vadd.f32 %v386, %v389
    %s391 = sld [smem:[#allocation6 + $0xa]]
    %v392 = vstv %s391
    %v393 = vadd.f32 %v390, %v392
    %v394 = vmax.f32 %v393, 0.0
    %s395 = sld [smem:[#allocation2 + $0xb]]
    %v396 = vstv %s395
    %v397 = vmul.f32 %v87, %v396
    %s398 = sld [smem:[#allocation2 + $0x8b]]
    %v399 = vstv %s398
    %v400 = vmul.f32 %v89, %v399
    %v401 = vadd.f32 %v397, %v400
    %s402 = sld [smem:[#allocation2 + $0x10b]]
    %v403 = vstv %s402
    %v404 = vmul.f32 %v91, %v403
    %v405 = vadd.f32 %v401, %v404
    %s406 = sld [smem:[#allocation2 + $0x18b]]
    %v407 = vstv %s406
    %v408 = vmul.f32 %v93, %v407
    %v409 = vadd.f32 %v405, %v408
    %s410 = sld [smem:[#allocation2 + $0x20b]]
    %v411 = vstv %s410
    %v412 = vmul.f32 %v95, %v411
    %v413 = vadd.f32 %v409, %v412
    %s414 = sld [smem:[#allocation2 + $0x28b]]
    %v415 = vstv %s414
    %v416 = vmul.f32 %v97, %v415
    %v417 = vadd.f32 %v413, %v416
    %s418 = sld [smem:[#allocation6 + $0xb]]
    %v419 = vstv %s418
    %v420 = vadd.f32 %v417, %v419
    %v421 = vmax.f32 %v420, 0.0
    %s422 = sld [smem:[#allocation8]]
    %v423 = vstv %s422
    %v424 = vmul.f32 %v124, %v423
    %s425 = sld [smem:[#allocation8 + $0x80]]
    %v426 = vstv %s425
    %v427 = vmul.f32 %v151, %v426
    %v428 = vadd.f32 %v424, %v427
    %s429 = sld [smem:[#allocation8 + $0x100]]
    %v430 = vstv %s429
    %v431 = vmul.f32 %v178, %v430
    %v432 = vadd.f32 %v428, %v431
    %s433 = sld [smem:[#allocation8 + $0x180]]
    %v434 = vstv %s433
    %v435 = vmul.f32 %v205, %v434
    %v436 = vadd.f32 %v432, %v435
    %s437 = sld [smem:[#allocation8 + $0x200]]
    %v438 = vstv %s437
    %v439 = vmul.f32 %v232, %v438
    %v440 = vadd.f32 %v436, %v439
    %s441 = sld [smem:[#allocation8 + $0x280]]
    %v442 = vstv %s441
    %v443 = vmul.f32 %v259, %v442
    %v444 = vadd.f32 %v440, %v443
    %s445 = sld [smem:[#allocation8 + $0x300]]
    %v446 = vstv %s445
    %v447 = vmul.f32 %v286, %v446
    %v448 = vadd.f32 %v444, %v447
    %s449 = sld [smem:[#allocation8 + $0x380]]
    %v450 = vstv %s449
    %v451 = vmul.f32 %v313, %v450
    %v452 = vadd.f32 %v448, %v451
    %s453 = sld [smem:[#allocation8 + $0x400]]
    %v454 = vstv %s453
    %v455 = vmul.f32 %v340, %v454
    %v456 = vadd.f32 %v452, %v455
    %s457 = sld [smem:[#allocation8 + $0x480]]
    %v458 = vstv %s457
    %v459 = vmul.f32 %v367, %v458
    %v460 = vadd.f32 %v456, %v459
    %s461 = sld [smem:[#allocation8 + $0x500]]
    %v462 = vstv %s461
    %v463 = vmul.f32 %v394, %v462
    %v464 = vadd.f32 %v460, %v463
    %s465 = sld [smem:[#allocation8 + $0x580]]
    %v466 = vstv %s465
    %v467 = vmul.f32 %v421, %v466
    %v468 = vadd.f32 %v464, %v467
    %s469 = sld [smem:[#allocation9]]
    %v470 = vstv %s469
    %v471 = vadd.f32 %v468, %v470
    %v472 = vxor.u32 %v471, 2147483648
    %v473 = vmul.f32 %v472, 1.442695
    %v474 = vpow.pop %v473
    %v475 = vadd.f32 %v474, 1.0
    %v476 = vrcp.pop %v475
    %v477 = vmul.f32 %v475, %v476
    %v478 = vsub.f32 1.0, %v477
    %v479 = vmul.f32 %v476, %v478
    %v480 = vadd.f32 %v476, %v479
    %vm481 = vweird.f32 %v475
    %vm482 = vweird.f32 %v476
    %vm483 = vmor %vm481, %vm482
    %v484 = vsel %vm483, %v476, %v480
    %v485 = vand.u32 2147483647, %v475
    %vm486 = vcmp.eq.f32.partialorder %v485, 8.507059e+37
    %v487 = vand.u32 %v475, 2147483648
    %v488 = vor.u32 1.1754944e-38, %v487
    %v489 = vsel %vm486, %v488, %v484
    %v490 = vmul.f32 1.0, %v489
    %491 = vst [vmem:[#allocation12] sm:$0xff] %v490
    %s492 = sld [smem:[#allocation8 + $0x1]]
    %v493 = vstv %s492
    %v494 = vmul.f32 %v124, %v493
    %s495 = sld [smem:[#allocation8 + $0x81]]
    %v496 = vstv %s495
    %v497 = vmul.f32 %v151, %v496
    %v498 = vadd.f32 %v494, %v497
    %s499 = sld [smem:[#allocation8 + $0x101]]
    %v500 = vstv %s499
    %v501 = vmul.f32 %v178, %v500
    %v502 = vadd.f32 %v498, %v501
    %s503 = sld [smem:[#allocation8 + $0x181]]
    %v504 = vstv %s503
    %v505 = vmul.f32 %v205, %v504
    %v506 = vadd.f32 %v502, %v505
    %s507 = sld [smem:[#allocation8 + $0x201]]
    %v508 = vstv %s507
    %v509 = vmul.f32 %v232, %v508
    %v510 = vadd.f32 %v506, %v509
    %s511 = sld [smem:[#allocation8 + $0x281]]
    %v512 = vstv %s511
    %v513 = vmul.f32 %v259, %v512
    %v514 = vadd.f32 %v510, %v513
    %s515 = sld [smem:[#allocation8 + $0x301]]
    %v516 = vstv %s515
    %v517 = vmul.f32 %v286, %v516
    %v518 = vadd.f32 %v514, %v517
    %s519 = sld [smem:[#allocation8 + $0x381]]
    %v520 = vstv %s519
    %v521 = vmul.f32 %v313, %v520
    %v522 = vadd.f32 %v518, %v521
    %s523 = sld [smem:[#allocation8 + $0x401]]
    %v524 = vstv %s523
    %v525 = vmul.f32 %v340, %v524
    %v526 = vadd.f32 %v522, %v525
    %s527 = sld [smem:[#allocation8 + $0x481]]
    %v528 = vstv %s527
    %v529 = vmul.f32 %v367, %v528
    %v530 = vadd.f32 %v526, %v529
    %s531 = sld [smem:[#allocation8 + $0x501]]
    %v532 = vstv %s531
    %v533 = vmul.f32 %v394, %v532
    %v534 = vadd.f32 %v530, %v533
    %s535 = sld [smem:[#allocation8 + $0x581]]
    %v536 = vstv %s535
    %v537 = vmul.f32 %v421, %v536
    %v538 = vadd.f32 %v534, %v537
    %s539 = sld [smem:[#allocation9 + $0x1]]
    %v540 = vstv %s539
    %v541 = vadd.f32 %v538, %v540
    %v542 = vxor.u32 %v541, 2147483648
    %v543 = vmul.f32 %v542, 1.442695
    %v544 = vpow.pop %v543
    %v545 = vadd.f32 %v544, 1.0
    %v546 = vrcp.pop %v545
    %v547 = vmul.f32 %v545, %v546
    %v548 = vsub.f32 1.0, %v547
    %v549 = vmul.f32 %v546, %v548
    %v550 = vadd.f32 %v546, %v549
    %vm551 = vweird.f32 %v545
    %vm552 = vweird.f32 %v546
    %vm553 = vmor %vm551, %vm552
    %v554 = vsel %vm553, %v546, %v550
    %v555 = vand.u32 2147483647, %v545
    %vm556 = vcmp.eq.f32.partialorder %v555, 8.507059e+37
    %v557 = vand.u32 %v545, 2147483648
    %v558 = vor.u32 1.1754944e-38, %v557
    %v559 = vsel %vm556, %v558, %v554
    %v560 = vmul.f32 1.0, %v559
    %s561 = scalar_lea.vmem [#allocation12], 8
    %562 = vst [vmem:[%s561] sm:$0xff] %v560
    %s563 = sld [smem:[#allocation8 + $0x2]]
    %v564 = vstv %s563
    %v565 = vmul.f32 %v124, %v564
    %s566 = sld [smem:[#allocation8 + $0x82]]
    %v567 = vstv %s566
    %v568 = vmul.f32 %v151, %v567
    %v569 = vadd.f32 %v565, %v568
    %s570 = sld [smem:[#allocation8 + $0x102]]
    %v571 = vstv %s570
    %v572 = vmul.f32 %v178, %v571
    %v573 = vadd.f32 %v569, %v572
    %s574 = sld [smem:[#allocation8 + $0x182]]
    %v575 = vstv %s574
    %v576 = vmul.f32 %v205, %v575
    %v577 = vadd.f32 %v573, %v576
    %s578 = sld [smem:[#allocation8 + $0x202]]
    %v579 = vstv %s578
    %v580 = vmul.f32 %v232, %v579
    %v581 = vadd.f32 %v577, %v580
    %s582 = sld [smem:[#allocation8 + $0x282]]
    %v583 = vstv %s582
    %v584 = vmul.f32 %v259, %v583
    %v585 = vadd.f32 %v581, %v584
    %s586 = sld [smem:[#allocation8 + $0x302]]
    %v587 = vstv %s586
    %v588 = vmul.f32 %v286, %v587
    %v589 = vadd.f32 %v585, %v588
    %s590 = sld [smem:[#allocation8 + $0x382]]
    %v591 = vstv %s590
    %v592 = vmul.f32 %v313, %v591
    %v593 = vadd.f32 %v589, %v592
    %s594 = sld [smem:[#allocation8 + $0x402]]
    %v595 = vstv %s594
    %v596 = vmul.f32 %v340, %v595
    %v597 = vadd.f32 %v593, %v596
    %s598 = sld [smem:[#allocation8 + $0x482]]
    %v599 = vstv %s598
    %v600 = vmul.f32 %v367, %v599
    %v601 = vadd.f32 %v597, %v600
    %s602 = sld [smem:[#allocation8 + $0x502]]
    %v603 = vstv %s602
    %v604 = vmul.f32 %v394, %v603
    %v605 = vadd.f32 %v601, %v604
    %s606 = sld [smem:[#allocation8 + $0x582]]
    %v607 = vstv %s606
    %v608 = vmul.f32 %v421, %v607
    %v609 = vadd.f32 %v605, %v608
    %s610 = sld [smem:[#allocation9 + $0x2]]
    %v611 = vstv %s610
    %v612 = vadd.f32 %v609, %v611
    %v613 = vxor.u32 %v612, 2147483648
    %v614 = vmul.f32 %v613, 1.442695
    %v615 = vpow.pop %v614
    %v616 = vadd.f32 %v615, 1.0
    %v617 = vrcp.pop %v616
    %v618 = vmul.f32 %v616, %v617
    %v619 = vsub.f32 1.0, %v618
    %v620 = vmul.f32 %v617, %v619
    %v621 = vadd.f32 %v617, %v620
    %vm622 = vweird.f32 %v616
    %vm623 = vweird.f32 %v617
    %vm624 = vmor %vm622, %vm623
    %v625 = vsel %vm624, %v617, %v621
    %v626 = vand.u32 2147483647, %v616
    %vm627 = vcmp.eq.f32.partialorder %v626, 8.507059e+37
    %v628 = vand.u32 %v616, 2147483648
    %v629 = vor.u32 1.1754944e-38, %v628
    %v630 = vsel %vm627, %v629, %v625
    %v631 = vmul.f32 1.0, %v630
    %s632 = scalar_lea.vmem [#allocation12], 16
    %633 = vst [vmem:[%s632] sm:$0xff] %v631
    %s634 = sld [smem:[#allocation8 + $0x3]]
    %v635 = vstv %s634
    %v636 = vmul.f32 %v124, %v635
    %s637 = sld [smem:[#allocation8 + $0x83]]
    %v638 = vstv %s637
    %v639 = vmul.f32 %v151, %v638
    %v640 = vadd.f32 %v636, %v639
    %s641 = sld [smem:[#allocation8 + $0x103]]
    %v642 = vstv %s641
    %v643 = vmul.f32 %v178, %v642
    %v644 = vadd.f32 %v640, %v643
    %s645 = sld [smem:[#allocation8 + $0x183]]
    %v646 = vstv %s645
    %v647 = vmul.f32 %v205, %v646
    %v648 = vadd.f32 %v644, %v647
    %s649 = sld [smem:[#allocation8 + $0x203]]
    %v650 = vstv %s649
    %v651 = vmul.f32 %v232, %v650
    %v652 = vadd.f32 %v648, %v651
    %s653 = sld [smem:[#allocation8 + $0x283]]
    %v654 = vstv %s653
    %v655 = vmul.f32 %v259, %v654
    %v656 = vadd.f32 %v652, %v655
    %s657 = sld [smem:[#allocation8 + $0x303]]
    %v658 = vstv %s657
    %v659 = vmul.f32 %v286, %v658
    %v660 = vadd.f32 %v656, %v659
    %s661 = sld [smem:[#allocation8 + $0x383]]
    %v662 = vstv %s661
    %v663 = vmul.f32 %v313, %v662
    %v664 = vadd.f32 %v660, %v663
    %s665 = sld [smem:[#allocation8 + $0x403]]
    %v666 = vstv %s665
    %v667 = vmul.f32 %v340, %v666
    %v668 = vadd.f32 %v664, %v667
    %s669 = sld [smem:[#allocation8 + $0x483]]
    %v670 = vstv %s669
    %v671 = vmul.f32 %v367, %v670
    %v672 = vadd.f32 %v668, %v671
    %s673 = sld [smem:[#allocation8 + $0x503]]
    %v674 = vstv %s673
    %v675 = vmul.f32 %v394, %v674
    %v676 = vadd.f32 %v672, %v675
    %s677 = sld [smem:[#allocation8 + $0x583]]
    %v678 = vstv %s677
    %v679 = vmul.f32 %v421, %v678
    %v680 = vadd.f32 %v676, %v679
    %s681 = sld [smem:[#allocation9 + $0x3]]
    %v682 = vstv %s681
    %v683 = vadd.f32 %v680, %v682
    %v684 = vxor.u32 %v683, 2147483648
    %v685 = vmul.f32 %v684, 1.442695
    %v686 = vpow.pop %v685
    %v687 = vadd.f32 %v686, 1.0
    %v688 = vrcp.pop %v687
    %v689 = vmul.f32 %v687, %v688
    %v690 = vsub.f32 1.0, %v689
    %v691 = vmul.f32 %v688, %v690
    %v692 = vadd.f32 %v688, %v691
    %vm693 = vweird.f32 %v687
    %vm694 = vweird.f32 %v688
    %vm695 = vmor %vm693, %vm694
    %v696 = vsel %vm695, %v688, %v692
    %v697 = vand.u32 2147483647, %v687
    %vm698 = vcmp.eq.f32.partialorder %v697, 8.507059e+37
    %v699 = vand.u32 %v687, 2147483648
    %v700 = vor.u32 1.1754944e-38, %v699
    %v701 = vsel %vm698, %v700, %v696
    %v702 = vmul.f32 1.0, %v701
    %s703 = scalar_lea.vmem [#allocation12], 24
    %704 = vst [vmem:[%s703] sm:$0xff] %v702
    %s705 = sld [smem:[#allocation8 + $0x4]]
    %v706 = vstv %s705
    %v707 = vmul.f32 %v124, %v706
    %s708 = sld [smem:[#allocation8 + $0x84]]
    %v709 = vstv %s708
    %v710 = vmul.f32 %v151, %v709
    %v711 = vadd.f32 %v707, %v710
    %s712 = sld [smem:[#allocation8 + $0x104]]
    %v713 = vstv %s712
    %v714 = vmul.f32 %v178, %v713
    %v715 = vadd.f32 %v711, %v714
    %s716 = sld [smem:[#allocation8 + $0x184]]
    %v717 = vstv %s716
    %v718 = vmul.f32 %v205, %v717
    %v719 = vadd.f32 %v715, %v718
    %s720 = sld [smem:[#allocation8 + $0x204]]
    %v721 = vstv %s720
    %v722 = vmul.f32 %v232, %v721
    %v723 = vadd.f32 %v719, %v722
    %s724 = sld [smem:[#allocation8 + $0x284]]
    %v725 = vstv %s724
    %v726 = vmul.f32 %v259, %v725
    %v727 = vadd.f32 %v723, %v726
    %s728 = sld [smem:[#allocation8 + $0x304]]
    %v729 = vstv %s728
    %v730 = vmul.f32 %v286, %v729
    %v731 = vadd.f32 %v727, %v730
    %s732 = sld [smem:[#allocation8 + $0x384]]
    %v733 = vstv %s732
    %v734 = vmul.f32 %v313, %v733
    %v735 = vadd.f32 %v731, %v734
    %s736 = sld [smem:[#allocation8 + $0x404]]
    %v737 = vstv %s736
    %v738 = vmul.f32 %v340, %v737
    %v739 = vadd.f32 %v735, %v738
    %s740 = sld [smem:[#allocation8 + $0x484]]
    %v741 = vstv %s740
    %v742 = vmul.f32 %v367, %v741
    %v743 = vadd.f32 %v739, %v742
    %s744 = sld [smem:[#allocation8 + $0x504]]
    %v745 = vstv %s744
    %v746 = vmul.f32 %v394, %v745
    %v747 = vadd.f32 %v743, %v746
    %s748 = sld [smem:[#allocation8 + $0x584]]
    %v749 = vstv %s748
    %v750 = vmul.f32 %v421, %v749
    %v751 = vadd.f32 %v747, %v750
    %s752 = sld [smem:[#allocation9 + $0x4]]
    %v753 = vstv %s752
    %v754 = vadd.f32 %v751, %v753
    %v755 = vxor.u32 %v754, 2147483648
    %v756 = vmul.f32 %v755, 1.442695
    %v757 = vpow.pop %v756
    %v758 = vadd.f32 %v757, 1.0
    %v759 = vrcp.pop %v758
    %v760 = vmul.f32 %v758, %v759
    %v761 = vsub.f32 1.0, %v760
    %v762 = vmul.f32 %v759, %v761
    %v763 = vadd.f32 %v759, %v762
    %vm764 = vweird.f32 %v758
    %vm765 = vweird.f32 %v759
    %vm766 = vmor %vm764, %vm765
    %v767 = vsel %vm766, %v759, %v763
    %v768 = vand.u32 2147483647, %v758
    %vm769 = vcmp.eq.f32.partialorder %v768, 8.507059e+37
    %v770 = vand.u32 %v758, 2147483648
    %v771 = vor.u32 1.1754944e-38, %v770
    %v772 = vsel %vm769, %v771, %v767
    %v773 = vmul.f32 1.0, %v772
    %s774 = scalar_lea.vmem [#allocation12], 32
    %775 = vst [vmem:[%s774] sm:$0xff] %v773
    %s776 = sld [smem:[#allocation8 + $0x5]]
    %v777 = vstv %s776
    %v778 = vmul.f32 %v124, %v777
    %s779 = sld [smem:[#allocation8 + $0x85]]
    %v780 = vstv %s779
    %v781 = vmul.f32 %v151, %v780
    %v782 = vadd.f32 %v778, %v781
    %s783 = sld [smem:[#allocation8 + $0x105]]
    %v784 = vstv %s783
    %v785 = vmul.f32 %v178, %v784
    %v786 = vadd.f32 %v782, %v785
    %s787 = sld [smem:[#allocation8 + $0x185]]
    %v788 = vstv %s787
    %v789 = vmul.f32 %v205, %v788
    %v790 = vadd.f32 %v786, %v789
    %s791 = sld [smem:[#allocation8 + $0x205]]
    %v792 = vstv %s791
    %v793 = vmul.f32 %v232, %v792
    %v794 = vadd.f32 %v790, %v793
    %s795 = sld [smem:[#allocation8 + $0x285]]
    %v796 = vstv %s795
    %v797 = vmul.f32 %v259, %v796
    %v798 = vadd.f32 %v794, %v797
    %s799 = sld [smem:[#allocation8 + $0x305]]
    %v800 = vstv %s799
    %v801 = vmul.f32 %v286, %v800
    %v802 = vadd.f32 %v798, %v801
    %s803 = sld [smem:[#allocation8 + $0x385]]
    %v804 = vstv %s803
    %v805 = vmul.f32 %v313, %v804
    %v806 = vadd.f32 %v802, %v805
    %s807 = sld [smem:[#allocation8 + $0x405]]
    %v808 = vstv %s807
    %v809 = vmul.f32 %v340, %v808
    %v810 = vadd.f32 %v806, %v809
    %s811 = sld [smem:[#allocation8 + $0x485]]
    %v812 = vstv %s811
    %v813 = vmul.f32 %v367, %v812
    %v814 = vadd.f32 %v810, %v813
    %s815 = sld [smem:[#allocation8 + $0x505]]
    %v816 = vstv %s815
    %v817 = vmul.f32 %v394, %v816
    %v818 = vadd.f32 %v814, %v817
    %s819 = sld [smem:[#allocation8 + $0x585]]
    %v820 = vstv %s819
    %v821 = vmul.f32 %v421, %v820
    %v822 = vadd.f32 %v818, %v821
    %s823 = sld [smem:[#allocation9 + $0x5]]
    %v824 = vstv %s823
    %v825 = vadd.f32 %v822, %v824
    %v826 = vxor.u32 %v825, 2147483648
    %v827 = vmul.f32 %v826, 1.442695
    %v828 = vpow.pop %v827
    %v829 = vadd.f32 %v828, 1.0
    %v830 = vrcp.pop %v829
    %v831 = vmul.f32 %v829, %v830
    %v832 = vsub.f32 1.0, %v831
    %v833 = vmul.f32 %v830, %v832
    %v834 = vadd.f32 %v830, %v833
    %vm835 = vweird.f32 %v829
    %vm836 = vweird.f32 %v830
    %vm837 = vmor %vm835, %vm836
    %v838 = vsel %vm837, %v830, %v834
    %v839 = vand.u32 2147483647, %v829
    %vm840 = vcmp.eq.f32.partialorder %v839, 8.507059e+37
    %v841 = vand.u32 %v829, 2147483648
    %v842 = vor.u32 1.1754944e-38, %v841
    %v843 = vsel %vm840, %v842, %v838
    %v844 = vmul.f32 1.0, %v843
    %s845 = scalar_lea.vmem [#allocation12], 40
    %846 = vst [vmem:[%s845] sm:$0xff] %v844
    // Predicated region
    $region42: #{tpu_custom_call.1} parent=1 // pred_check
      _
    $region43: #{tpu_custom_call.1} parent=1 // pred_check_branch
      %848 = sbr.rel (0) target = $region45
    $region44: #{tpu_custom_call.1} parent=1 // pred_region
      %850 = vsyncadd [#allocation4], 0
      %s851 = sshll.u32 [#allocation12], 4
      %s852 = int_to_ptr.vmem [resolvable:$true] %s851
      %s853 = sshll.u32 %s5, 4
      %s854 = int_to_ptr.hbm [resolvable:$true] %s853
      %859 = dma.vmem_to_hbm [thread:$0]  %s852, 768, %s854, [#allocation4], 128, 128, 8
    $region45: #{tpu_custom_call.1} parent=1 // pred_fallthru
      _
    // Predicated region
    $region46: #{tpu_custom_call.1} parent=1 // pred_check
      _
    $region47: #{tpu_custom_call.1} parent=1 // pred_check_branch
      %861 = sbr.rel (0) target = $region49
    $region48: #{tpu_custom_call.1} parent=1 // pred_region
      %863 = dma.done [#allocation4], 768
    $region49: #{tpu_custom_call.1} parent=1 // pred_fallthru
      _
    %864 = vsyncpa [#allocation3], 1
    %865 = vsyncpa [#allocation4], 1
    %866 = vsyncpa [#allocation5], 1
    %867 = vsyncpa [#allocation7], 1
    %868 = vsyncpa [#allocation10], 1

</llo_original>
